<compile_context>
chip_gen: v7x
topology: tpu7x:2x2x1
jax: 0.10.0
libtpu: 0.0.40
codegen_flags: <defaults>
</compile_context>

<pallas_src>
import math
import functools

import jax
import jax.numpy as jnp
from jax.experimental import pallas as pl
from jax.experimental.pallas import tpu as pltpu


def _make_kernel(d_model: int, dropout_p: float, training: bool):
    apply_dropout = training and dropout_p > 0.0
    if apply_dropout:
        # keep iff bits >= round(p * 2^32)  ->  P(keep) = 1 - p  (integer compare)
        thr = min(int(round(dropout_p * 2.0 ** 32)), 2 ** 32 - 1)
        scale = 1.0 / (1.0 - dropout_p)

    def body(x_ref, o_ref, bits_ref=None):
        ts, _, D = x_ref.shape
        blk = pl.program_id(0)

        # absolute sequence position for this block, shape (ts, 1, 1)
        pos = (blk * ts + jax.lax.broadcasted_iota(jnp.int32, (ts, 1, 1), 0)
               ).astype(jnp.float32)
        # feature (lane) index, shape (1, 1, D); div_term computed once per block
        lane = jax.lax.broadcasted_iota(jnp.int32, (1, 1, D), 2)
        even = (lane - (lane % 2)).astype(jnp.float32)          # 2 * (i // 2)
        div_term = jnp.exp(even * (-math.log(10000.0) / d_model))  # (1, 1, D)

        angle = pos * div_term                                   # (ts, 1, D)
        pe = jnp.where(lane % 2 == 0, jnp.sin(angle), jnp.cos(angle))  # (ts, 1, D)

        # add in f32, broadcast PE over the batch axis; cast once at the end
        y = x_ref[...].astype(jnp.float32) + pe                  # (ts, B, D)

        if apply_dropout:
            keep = bits_ref[...] >= jnp.uint32(thr)              # unsigned compare
            y = jnp.where(keep, y * jnp.float32(scale), 0.0)

        o_ref[...] = y.astype(o_ref.dtype)

    if apply_dropout:
        def kernel(x_ref, bits_ref, o_ref):
            body(x_ref, o_ref, bits_ref)
    else:
        def kernel(x_ref, o_ref):
            body(x_ref, o_ref)
    return kernel


def _pick_block_seq(S: int, B: int, D: int, itemsize: int,
                    target_bytes: int = 2 * 1024 * 1024) -> int:
    """Largest divisor of S whose (ts, B, D) block stays within ~target_bytes
    (keeps double-buffered streams well under v5e/v6e/v7x scoped-VMEM limits)."""
    best = 1
    for ts in range(1, S + 1):
        if S % ts == 0 and ts * B * D * itemsize <= target_bytes:
            best = ts
    return best


@functools.partial(
    jax.jit, static_argnames=("d_model", "dropout_p", "training", "block_seq")
)
def positional_encoding_forward(
    x, rng_key=None, *, d_model: int, dropout_p: float = 0.1,
    training: bool = False, block_seq: int | None = None
):
    S, B, D = x.shape
    assert D == d_model
    itemsize = jnp.dtype(x.dtype).itemsize
    ts = block_seq if block_seq is not None else _pick_block_seq(S, B, D, itemsize)
    assert S % ts == 0  # TODO(synk): ragged / padded sequence lengths unsupported

    apply_dropout = training and dropout_p > 0.0
    kernel = _make_kernel(d_model, dropout_p, training)

    spec = pl.BlockSpec((ts, B, D), lambda i: (i, 0, 0))
    in_specs = [spec]
    args = [x]
    if apply_dropout:
        if rng_key is None:
            raise ValueError("rng_key is required when training with dropout_p > 0")
        bits = jax.random.bits(rng_key, (S, B, D), dtype=jnp.uint32)
        in_specs.append(pl.BlockSpec((ts, B, D), lambda i: (i, 0, 0)))
        args.append(bits)

    return pl.pallas_call(
        kernel,
        out_shape=jax.ShapeDtypeStruct((S, B, D), x.dtype),
        grid=(S // ts,),
        in_specs=in_specs,
        out_specs=spec,
        compiler_params=pltpu.CompilerParams(dimension_semantics=("parallel",)),
    )(*args)


def _reference_pos_encoding(S: int, d_model: int):
    """Pure-JAX replica of the PyTorch __init__ buffer (first S rows)."""
    position = jnp.arange(S, dtype=jnp.float32)[:, None]                    # (S, 1)
    div_term = jnp.exp(
        jnp.arange(0, d_model, 2, dtype=jnp.float32) * (-math.log(10000.0) / d_model)
    )                                                                        # (D/2,)
    pe = jnp.zeros((S, 1, d_model), dtype=jnp.float32)
    pe = pe.at[:, 0, 0::2].set(jnp.sin(position * div_term))
    pe = pe.at[:, 0, 1::2].set(jnp.cos(position * div_term))
    return pe


if __name__ == "__main__":
    # small shapes implied by the forward: (seq, batch, d_model)
    S, B, D = 8, 2, 32
    key = jax.random.PRNGKey(0)
    kx, kd = jax.random.split(key)
    x = jax.random.normal(kx, (S, B, D), dtype=jnp.float32)

    # eval-mode forward (dropout = identity) — deterministic numerical check
    out = positional_encoding_forward(x, d_model=D, dropout_p=0.1, training=False)
    out = jax.block_until_ready(out)

    ref = x + _reference_pos_encoding(S, D)          # broadcast over batch axis
    assert out.shape == (S, B, D)
    assert jnp.allclose(out, ref, atol=1e-5, rtol=1e-5), "mismatch vs reference"

    # training path: every output is either 0 (dropped) or (x+pe)/(1-p) (kept)
    out_train = positional_encoding_forward(
        x, kd, d_model=D, dropout_p=0.1, training=True
    )
    out_train = jax.block_until_ready(out_train)
    assert out_train.shape == (S, B, D)
    assert bool(jnp.all(jnp.isfinite(out_train)))
    scale = 1.0 / (1.0 - 0.1)
    ok = jnp.isclose(out_train, ref * scale, atol=1e-5, rtol=1e-5) | (out_train == 0.0)
    assert bool(jnp.all(ok)), "dropout outputs not in {0, (x+pe)/(1-p)}"

    print("KERNEL_OK")
</pallas_src>

<mosaic_0001>
module attributes {stable_mosaic.version = 11 : i64} {
  func.func @kernel(%arg0: i32, %arg1: memref<8x2x32xf32, #tpu.memory_space<vmem>>, %arg2: memref<8x2x32xf32, #tpu.memory_space<vmem>>) attributes {dimension_semantics = [#tpu.dimension_semantics<parallel>], iteration_bounds = array<i64: 1>, scalar_prefetch = 0 : i64, scratch_operands = 0 : i64, tpu.core_type = #tpu.core_type<tc>, window_params = [{transform_indices = @transform_0, window_bounds = array<i64: 8, 2, 32>}, {transform_indices = @transform_1, window_bounds = array<i64: 8, 2, 32>}]} {
    %c8_i32 = arith.constant 8 : i32
    %0 = arith.muli %arg0, %c8_i32 : i32
    %1 = tpu.iota {dimensions = array<i32: 0>} : vector<8x1x1xi32>
    %2 = vector.broadcast %0 : i32 to vector<8x1x1xi32>
    %3 = arith.addi %2, %1 : vector<8x1x1xi32>
    %4 = arith.sitofp %3 : vector<8x1x1xi32> to vector<8x1x1xf32>
    %5 = tpu.iota {dimensions = array<i32: 2>} : vector<1x1x32xi32>
    %c2_i32 = arith.constant 2 : i32
    %c0_i32 = arith.constant 0 : i32
    %6 = arith.cmpi eq, %c2_i32, %c0_i32 : i32
    %c1_i32 = arith.constant 1 : i32
    %7 = arith.select %6, %c1_i32, %c2_i32 : i32
    %8 = vector.broadcast %7 : i32 to vector<1x1x32xi32>
    %9 = arith.remsi %5, %8 : vector<1x1x32xi32>
    %c0_i32_0 = arith.constant 0 : i32
    %10 = vector.broadcast %c0_i32_0 : i32 to vector<1x1x32xi32>
    %11 = arith.cmpi ne, %9, %10 : vector<1x1x32xi32>
    %c0_i32_1 = arith.constant 0 : i32
    %12 = vector.broadcast %c0_i32_1 : i32 to vector<1x1x32xi32>
    %13 = arith.cmpi slt, %9, %12 : vector<1x1x32xi32>
    %c0_i32_2 = arith.constant 0 : i32
    %14 = arith.cmpi slt, %7, %c0_i32_2 : i32
    %15 = vector.broadcast %14 : i1 to vector<1x1x32xi1>
    %16 = vector.broadcast %15 : vector<1x1x32xi1> to vector<1x1x32xi1>
    %17 = arith.xori %13, %16 : vector<1x1x32xi1>
    %18 = arith.andi %17, %11 : vector<1x1x32xi1>
    %19 = vector.broadcast %7 : i32 to vector<1x1x32xi32>
    %20 = arith.addi %9, %19 : vector<1x1x32xi32>
    %21 = arith.select %18, %20, %9 : vector<1x1x32xi1>, vector<1x1x32xi32>
    %22 = arith.subi %5, %21 : vector<1x1x32xi32>
    %23 = arith.sitofp %22 : vector<1x1x32xi32> to vector<1x1x32xf32>
    %cst = arith.constant -0.287823141 : f32
    %24 = vector.broadcast %cst : f32 to vector<1x1x32xf32>
    %25 = arith.mulf %23, %24 : vector<1x1x32xf32>
    %26 = math.exp %25 : vector<1x1x32xf32>
    %27 = vector.broadcast %4 : vector<8x1x1xf32> to vector<8x1x32xf32>
    %28 = vector.broadcast %26 : vector<1x1x32xf32> to vector<8x1x32xf32>
    %29 = arith.mulf %27, %28 : vector<8x1x32xf32>
    %c2_i32_3 = arith.constant 2 : i32
    %c0_i32_4 = arith.constant 0 : i32
    %30 = arith.cmpi eq, %c2_i32_3, %c0_i32_4 : i32
    %c1_i32_5 = arith.constant 1 : i32
    %31 = arith.select %30, %c1_i32_5, %c2_i32_3 : i32
    %32 = vector.broadcast %31 : i32 to vector<1x1x32xi32>
    %33 = arith.remsi %5, %32 : vector<1x1x32xi32>
    %c0_i32_6 = arith.constant 0 : i32
    %34 = vector.broadcast %c0_i32_6 : i32 to vector<1x1x32xi32>
    %35 = arith.cmpi ne, %33, %34 : vector<1x1x32xi32>
    %c0_i32_7 = arith.constant 0 : i32
    %36 = vector.broadcast %c0_i32_7 : i32 to vector<1x1x32xi32>
    %37 = arith.cmpi slt, %33, %36 : vector<1x1x32xi32>
    %c0_i32_8 = arith.constant 0 : i32
    %38 = arith.cmpi slt, %31, %c0_i32_8 : i32
    %39 = vector.broadcast %38 : i1 to vector<1x1x32xi1>
    %40 = vector.broadcast %39 : vector<1x1x32xi1> to vector<1x1x32xi1>
    %41 = arith.xori %37, %40 : vector<1x1x32xi1>
    %42 = arith.andi %41, %35 : vector<1x1x32xi1>
    %43 = vector.broadcast %31 : i32 to vector<1x1x32xi32>
    %44 = arith.addi %33, %43 : vector<1x1x32xi32>
    %45 = arith.select %42, %44, %33 : vector<1x1x32xi1>, vector<1x1x32xi32>
    %c0_i32_9 = arith.constant 0 : i32
    %46 = vector.broadcast %c0_i32_9 : i32 to vector<1x1x32xi32>
    %47 = arith.cmpi eq, %45, %46 : vector<1x1x32xi32>
    %48 = math.sin %29 : vector<8x1x32xf32>
    %49 = math.cos %29 : vector<8x1x32xf32>
    %50 = vector.shape_cast %47 : vector<1x1x32xi1> to vector<1x1x32xi1>
    %51 = vector.broadcast %50 : vector<1x1x32xi1> to vector<8x1x32xi1>
    %52 = arith.select %51, %48, %49 : vector<8x1x32xi1>, vector<8x1x32xf32>
    %c0 = arith.constant 0 : index
    %c0_10 = arith.constant 0 : index
    %c0_11 = arith.constant 0 : index
    %53 = vector.load %arg1[%c0, %c0_10, %c0_11] : memref<8x2x32xf32, #tpu.memory_space<vmem>>, vector<8x2x32xf32>
    %54 = vector.broadcast %52 : vector<8x1x32xf32> to vector<8x2x32xf32>
    %55 = arith.addf %53, %54 : vector<8x2x32xf32>
    %c0_12 = arith.constant 0 : index
    %c0_13 = arith.constant 0 : index
    %c0_14 = arith.constant 0 : index
    %56 = vector.load %arg2[%c0_12, %c0_13, %c0_14] : memref<8x2x32xf32, #tpu.memory_space<vmem>>, vector<8x2x32xf32>
    tpu.vector_store %arg2[%c0_12, %c0_13, %c0_14], %55 {strides = array<i32>} : memref<8x2x32xf32, #tpu.memory_space<vmem>>, vector<8x2x32xf32>,
    return
  }
  func.func @transform_0(%arg0: i32) -> (i32, i32, i32) {
    %c0_i32 = arith.constant 0 : i32
    %c0_i32_0 = arith.constant 0 : i32
    %c0_i32_1 = arith.constant 0 : i32
    return %arg0, %c0_i32, %c0_i32_0 : i32, i32, i32
  }
  func.func @transform_1(%arg0: i32) -> (i32, i32, i32) {
    %c0_i32 = arith.constant 0 : i32
    %c0_i32_0 = arith.constant 0 : i32
    %c0_i32_1 = arith.constant 0 : i32
    return %arg0, %c0_i32, %c0_i32_0 : i32, i32, i32
  }
}

</mosaic_0001>

<llo_original>
// kernel: positional_encoding_forward.1
$region0: #{positional_encoding_forward.1}
  #allocation0 [shape = 'u32[]', space=smem, size = 0x4, offset = 0x4, fixed_abs, tag = 'smem constant byte address 0x4 - core index']
  #allocation1 [shape = 'u32[144,128]{1,0:T(1,128)}', space=vmem, size = 0x12000, scoped, tag = 'internal scratch']
  %s0 = inlined_call_operand.hbm [shape: f32[8,2,32], index: 0, kind: input, shape index: {}]
  %s1 = inlined_call_operand.hbm [shape: f32[8,2,32], index: 1, kind: output, shape index: {}]
  %s2 = sld [smem:[#allocation0]]
  $region18: #{positional_encoding_forward.1} parent=0
    _
  %s4 = ssub.s32 1, %s2
  %s5 = scalar_select 0, %s4, %s2
  $region1: #{positional_encoding_forward.1} parent=0
    #allocation2 [shape = 'u8[8192]{0}', space=vmem, size = 0x2000, scoped, tag = 'input window, operand 0, single buffered']
    #allocation3 [shape = 's32[1]{0}', space=sflag, size = 0x4, scoped, tag = 'scoped memory for positional_encoding_forward.1']
    #allocation4 [shape = 's32[1]{0}', space=sflag, size = 0x4, scoped, tag = 'scoped memory for positional_encoding_forward.1']
    #allocation5 [shape = 'u8[8192]{0}', space=vmem, size = 0x2000, scoped, tag = 'output window, operand 0, single buffered']
    %6 = vsyncpa [#allocation3], 0
    %7 = vsyncpa [#allocation4], 0
    // Predicated region
    $region2: #{positional_encoding_forward.1} parent=1 // pred_check
      _
    $region3: #{positional_encoding_forward.1} parent=1 // pred_check_branch
      %9 = sbr.rel (0) target = $region5
    $region4: #{positional_encoding_forward.1} parent=1 // pred_region
      %s11 = ssub.s32 256, 256
      %12 = vsyncadd [#allocation3], %s11
      %s13 = sshll.u32 [#allocation2], 4
      %s14 = int_to_ptr.vmem [resolvable:$true] %s13
      %19 = dma.hbm_to_vmem [thread:$0]  %s0, 256, %s14, [#allocation3], 32, 32, 2
    $region5: #{positional_encoding_forward.1} parent=1 // pred_fallthru
      _
    // Predicated region
    $region6: #{positional_encoding_forward.1} parent=1 // pred_check
      _
    $region7: #{positional_encoding_forward.1} parent=1 // pred_check_branch
      %21 = sbr.rel (0) target = $region9
    $region8: #{positional_encoding_forward.1} parent=1 // pred_region
      %22 = dma.done [#allocation3], 256
    $region9: #{positional_encoding_forward.1} parent=1 // pred_fallthru
      _
    %s23 = smul.u32 0, 8
    %v24 = vstv %s23
    %v25 = vadd.s32 %v24, 1
    %v26 = vadd.s32 %v24, 2
    %v27 = vadd.s32 %v24, 3
    %v28 = vadd.s32 %v24, 4
    %v29 = vadd.s32 %v24, 5
    %v30 = vadd.s32 %v24, 6
    %v31 = vadd.s32 %v24, 7
    %v32 = vcvt.s32.f32 %v24
    %v33 = vcvt.s32.f32 %v25
    %v34 = vcvt.s32.f32 %v26
    %v35 = vcvt.s32.f32 %v27
    %v36 = vcvt.s32.f32 %v28
    %v37 = vcvt.s32.f32 %v29
    %v38 = vcvt.s32.f32 %v30
    %v39 = vcvt.s32.f32 %v31
    %v40 = vlaneseq
    %v41 = vand.u32 %v40, 127
    %vm42 = vcmp.lt.s32.totalorder %v41, 0
    %v43 = vsub.s32 0, %v41
    %v44 = vsel %vm42, %v43, %v41
    %v45 = vshrl.u32 %v44, 1
    %v46 = vand.u32 %v44, 1
    %v47 = vsub.s32 0, %v46
    %v48 = vsel %vm42, %v47, %v46
    %vm49 = vcmp.ne.s32.totalorder %v48, 0
    %vm50 = vcmp.lt.s32.totalorder %v48, 0
    %vm51 = vmand %vm50, %vm49
    %v52 = vadd.s32 %v48, 2
    %v53 = vsel %vm51, %v52, %v48
    %v54 = vsub.s32 %v41, %v53
    %v55 = vcvt.s32.f32 %v54
    %v56 = vmul.f32 %v55, -0.28782314
    %v57 = vmul.f32 %v56, 1.442695
    %v58 = vpow.pop %v57
    %v59 = vmul.f32 %v32, %v58
    %v60 = vmul.f32 %v33, %v58
    %v61 = vmul.f32 %v34, %v58
    %v62 = vmul.f32 %v35, %v58
    %v63 = vmul.f32 %v36, %v58
    %v64 = vmul.f32 %v37, %v58
    %v65 = vmul.f32 %v38, %v58
    %v66 = vmul.f32 %v39, %v58
    %vm67 = vcmp.eq.s32.totalorder %v53, 0
    %v68 = vand.u32 2147483647, %v59
    %vm69 = vcmp.le.f32.partialorder %v68, 0.7853982
    %vm70 = vcmp.lt.s32.totalorder %v59, 0
    %v71 = vand.u32 %v59, 2139095040
    %v72 = vshrl.u32 %v71, 23
    %v73 = vsub.s32 %v72, 127
    %v74 = vand.u32 2147483647, %v59
    %v75 = vand.u32 %v74, 8388607
    %v76 = vor.u32 %v75, 8388608
    %v77 = vsub.s32 0, %v76
    %v78 = vadd.s32 %v73, 1
    %vm79 = vcmp.gt.s32.totalorder %v78, 0
    %v80 = vsel %vm79, %v78, 0
    %v81 = vshrl.u32 %v80, 5
    %v82 = vand.u32 %v80, 31
    %v83 = vsub.s32 32, %v82
    %v84 = vshrl.u32 683565275, %v83
    %v85 = vshll.u32 683565275, %v82
    %v86 = vshrl.u32 2475754826, %v83
    %v87 = vor.u32 %v85, %v86
    %v88 = vshll.u32 2475754826, %v82
    %v89 = vshrl.u32 2131351028, %v83
    %v90 = vor.u32 %v88, %v89
    %v91 = vshll.u32 2131351028, %v82
    %v92 = vshrl.u32 2102212464, %v83
    %v93 = vor.u32 %v91, %v92
    %v94 = vshll.u32 2102212464, %v82
    %v95 = vshrl.u32 920167782, %v83
    %v96 = vor.u32 %v94, %v95
    %v97 = vshll.u32 920167782, %v82
    %v98 = vshrl.u32 1326507024, %v83
    %v99 = vor.u32 %v97, %v98
    %vm100 = vcmp.lt.s32.totalorder %v81, 1
    %vm101 = vcmp.lt.s32.totalorder %v81, 2
    %vm102 = vcmp.lt.s32.totalorder %v81, 3
    %vm103 = vcmp.lt.s32.totalorder %v81, 4
    %v104 = vsel %vm100, %v84, %v87
    %v105 = vsel %vm103, %v93, 2102212464
    %v106 = vsel %vm102, %v90, %v105
    %v107 = vsel %vm101, %v104, %v106
    %v108 = vsel %vm100, %v87, %v90
    %v109 = vsel %vm103, %v96, 920167782
    %v110 = vsel %vm102, %v93, %v109
    %v111 = vsel %vm101, %v108, %v110
    %v112 = vsel %vm100, %v90, %v93
    %v113 = vsel %vm103, %v99, 1326507024
    %v114 = vsel %vm102, %v96, %v113
    %v115 = vsel %vm101, %v112, %v114
    %v116 = vshll.u32 %v76, 8
    %v117 = vmul.u32.u64.compose %v116, %v115
    %v118 = vextract.low.u32 %v117
    %v119 = vextract.high.u32 %v117
    %v120 = vmul.u32.u64.compose %v116, %v111
    %v121 = vextract.low.u32 %v120
    %v122 = vextract.high.u32 %v120
    %v123 = vmul.u32 %v116, %v107
    %v124 = vadd.s32 %v119, %v121
    %vm125 = vc.u32 %v119, %v121
    %v126 = vadd.s32 %v122, 1
    %v127 = vsel %vm125, %v126, %v122
    %v128 = vadd.s32 %v123, %v127
    %v129 = vadd.s32 %v128, 536870912
    %v130 = vshrl.u32 %v129, 30
    %v131 = vshll.u32 %v130, 30
    %v132 = vsub.s32 %v128, %v131
    %vm133 = vcmp.lt.s32.totalorder %v132, 0
    %v134 = vsub.s32 0, %v132
    %v135 = vsel %vm133, %v134, %v132
    %v136 = vclz %v135
    %v137 = vsub.s32 %v136, 2
    %vm138 = vcmp.gt.s32.totalorder 0, %v137
    %v139 = vsel %vm138, 0, %v137
    %v140 = vsub.s32 32, %v139
    %v141 = vshll.u32 %v132, %v139
    %v142 = vshrl.u32 %v124, %v140
    %v143 = vor.u32 %v141, %v142
    %v144 = vsub.s32 4294967266, %v139
    %v145 = vadd.s32 %v144, 127
    %v146 = vshll.u32 %v145, 23
    %v147 = vor.u32 4788187, %v146
    %v148 = vand.u32 2147483647, %v147
    %v150 = vcvt.s32.f32 %v143
    %v151 = vmul.f32 %v150, %v148
    %v152 = vxor.u32 %v151, 2147483648
    %v153 = vsel %vm70, %v152, %v151
    %v154 = vsub.s32 4, %v130
    %v155 = vsel %vm70, %v154, %v130
    %v156 = vsel %vm69, %v59, %v153
    %v157 = vsel %vm69, 0, %v155
    %v158 = vcosq.f32.pop %v156
    %v159 = vsinq.f32.pop %v156
    %vm160 = vweird.f32 %v59
    %v161 = vadd.s32 %v157, 3
    %v162 = vand.u32 %v161, 3
    %vm163 = vcmp.lt.s32.totalorder %v162, 2
    %vm164 = vcmp.eq.s32.totalorder %v162, 0
    %v165 = vxor.u32 %v159, 2147483648
    %v166 = vsel %vm164, %v158, %v165
    %vm167 = vcmp.eq.s32.totalorder %v162, 2
    %v168 = vxor.u32 %v158, 2147483648
    %v169 = vsel %vm167, %v168, %v159
    %v170 = vsel %vm163, %v166, %v169
    %v171 = vsel %vm160, nan, %v170
    %v172 = vand.u32 2147483647, %v60
    %vm173 = vcmp.le.f32.partialorder %v172, 0.7853982
    %vm174 = vcmp.lt.s32.totalorder %v60, 0
    %v175 = vand.u32 %v60, 2139095040
    %v176 = vshrl.u32 %v175, 23
    %v177 = vsub.s32 %v176, 127
    %v178 = vand.u32 2147483647, %v60
    %v179 = vand.u32 %v178, 8388607
    %v180 = vor.u32 %v179, 8388608
    %v181 = vsub.s32 0, %v180
    %v182 = vadd.s32 %v177, 1
    %vm183 = vcmp.gt.s32.totalorder %v182, 0
    %v184 = vsel %vm183, %v182, 0
    %v185 = vshrl.u32 %v184, 5
    %v186 = vand.u32 %v184, 31
    %v187 = vsub.s32 32, %v186
    %v188 = vshrl.u32 683565275, %v187
    %v189 = vshll.u32 683565275, %v186
    %v190 = vshrl.u32 2475754826, %v187
    %v191 = vor.u32 %v189, %v190
    %v192 = vshll.u32 2475754826, %v186
    %v193 = vshrl.u32 2131351028, %v187
    %v194 = vor.u32 %v192, %v193
    %v195 = vshll.u32 2131351028, %v186
    %v196 = vshrl.u32 2102212464, %v187
    %v197 = vor.u32 %v195, %v196
    %v198 = vshll.u32 2102212464, %v186
    %v199 = vshrl.u32 920167782, %v187
    %v200 = vor.u32 %v198, %v199
    %v201 = vshll.u32 920167782, %v186
    %v202 = vshrl.u32 1326507024, %v187
    %v203 = vor.u32 %v201, %v202
    %vm204 = vcmp.lt.s32.totalorder %v185, 1
    %vm205 = vcmp.lt.s32.totalorder %v185, 2
    %vm206 = vcmp.lt.s32.totalorder %v185, 3
    %vm207 = vcmp.lt.s32.totalorder %v185, 4
    %v208 = vsel %vm204, %v188, %v191
    %v209 = vsel %vm207, %v197, 2102212464
    %v210 = vsel %vm206, %v194, %v209
    %v211 = vsel %vm205, %v208, %v210
    %v212 = vsel %vm204, %v191, %v194
    %v213 = vsel %vm207, %v200, 920167782
    %v214 = vsel %vm206, %v197, %v213
    %v215 = vsel %vm205, %v212, %v214
    %v216 = vsel %vm204, %v194, %v197
    %v217 = vsel %vm207, %v203, 1326507024
    %v218 = vsel %vm206, %v200, %v217
    %v219 = vsel %vm205, %v216, %v218
    %v220 = vshll.u32 %v180, 8
    %v221 = vmul.u32.u64.compose %v220, %v219
    %v222 = vextract.low.u32 %v221
    %v223 = vextract.high.u32 %v221
    %v224 = vmul.u32.u64.compose %v220, %v215
    %v225 = vextract.low.u32 %v224
    %v226 = vextract.high.u32 %v224
    %v227 = vmul.u32 %v220, %v211
    %v228 = vadd.s32 %v223, %v225
    %vm229 = vc.u32 %v223, %v225
    %v230 = vadd.s32 %v226, 1
    %v231 = vsel %vm229, %v230, %v226
    %v232 = vadd.s32 %v227, %v231
    %v233 = vadd.s32 %v232, 536870912
    %v234 = vshrl.u32 %v233, 30
    %v235 = vshll.u32 %v234, 30
    %v236 = vsub.s32 %v232, %v235
    %vm237 = vcmp.lt.s32.totalorder %v236, 0
    %v238 = vsub.s32 0, %v236
    %v239 = vsel %vm237, %v238, %v236
    %v240 = vclz %v239
    %v241 = vsub.s32 %v240, 2
    %vm242 = vcmp.gt.s32.totalorder 0, %v241
    %v243 = vsel %vm242, 0, %v241
    %v244 = vsub.s32 32, %v243
    %v245 = vshll.u32 %v236, %v243
    %v246 = vshrl.u32 %v228, %v244
    %v247 = vor.u32 %v245, %v246
    %v248 = vsub.s32 4294967266, %v243
    %v249 = vadd.s32 %v248, 127
    %v250 = vshll.u32 %v249, 23
    %v251 = vor.u32 4788187, %v250
    %v252 = vand.u32 2147483647, %v251
    %v254 = vcvt.s32.f32 %v247
    %v255 = vmul.f32 %v254, %v252
    %v256 = vxor.u32 %v255, 2147483648
    %v257 = vsel %vm174, %v256, %v255
    %v258 = vsub.s32 4, %v234
    %v259 = vsel %vm174, %v258, %v234
    %v260 = vsel %vm173, %v60, %v257
    %v261 = vsel %vm173, 0, %v259
    %v262 = vcosq.f32.pop %v260
    %v263 = vsinq.f32.pop %v260
    %vm264 = vweird.f32 %v60
    %v265 = vadd.s32 %v261, 3
    %v266 = vand.u32 %v265, 3
    %vm267 = vcmp.lt.s32.totalorder %v266, 2
    %vm268 = vcmp.eq.s32.totalorder %v266, 0
    %v269 = vxor.u32 %v263, 2147483648
    %v270 = vsel %vm268, %v262, %v269
    %vm271 = vcmp.eq.s32.totalorder %v266, 2
    %v272 = vxor.u32 %v262, 2147483648
    %v273 = vsel %vm271, %v272, %v263
    %v274 = vsel %vm267, %v270, %v273
    %v275 = vsel %vm264, nan, %v274
    %v276 = vand.u32 2147483647, %v61
    %vm277 = vcmp.le.f32.partialorder %v276, 0.7853982
    %vm278 = vcmp.lt.s32.totalorder %v61, 0
    %v279 = vand.u32 %v61, 2139095040
    %v280 = vshrl.u32 %v279, 23
    %v281 = vsub.s32 %v280, 127
    %v282 = vand.u32 2147483647, %v61
    %v283 = vand.u32 %v282, 8388607
    %v284 = vor.u32 %v283, 8388608
    %v285 = vsub.s32 0, %v284
    %v286 = vadd.s32 %v281, 1
    %vm287 = vcmp.gt.s32.totalorder %v286, 0
    %v288 = vsel %vm287, %v286, 0
    %v289 = vshrl.u32 %v288, 5
    %v290 = vand.u32 %v288, 31
    %v291 = vsub.s32 32, %v290
    %v292 = vshrl.u32 683565275, %v291
    %v293 = vshll.u32 683565275, %v290
    %v294 = vshrl.u32 2475754826, %v291
    %v295 = vor.u32 %v293, %v294
    %v296 = vshll.u32 2475754826, %v290
    %v297 = vshrl.u32 2131351028, %v291
    %v298 = vor.u32 %v296, %v297
    %v299 = vshll.u32 2131351028, %v290
    %v300 = vshrl.u32 2102212464, %v291
    %v301 = vor.u32 %v299, %v300
    %v302 = vshll.u32 2102212464, %v290
    %v303 = vshrl.u32 920167782, %v291
    %v304 = vor.u32 %v302, %v303
    %v305 = vshll.u32 920167782, %v290
    %v306 = vshrl.u32 1326507024, %v291
    %v307 = vor.u32 %v305, %v306
    %vm308 = vcmp.lt.s32.totalorder %v289, 1
    %vm309 = vcmp.lt.s32.totalorder %v289, 2
    %vm310 = vcmp.lt.s32.totalorder %v289, 3
    %vm311 = vcmp.lt.s32.totalorder %v289, 4
    %v312 = vsel %vm308, %v292, %v295
    %v313 = vsel %vm311, %v301, 2102212464
    %v314 = vsel %vm310, %v298, %v313
    %v315 = vsel %vm309, %v312, %v314
    %v316 = vsel %vm308, %v295, %v298
    %v317 = vsel %vm311, %v304, 920167782
    %v318 = vsel %vm310, %v301, %v317
    %v319 = vsel %vm309, %v316, %v318
    %v320 = vsel %vm308, %v298, %v301
    %v321 = vsel %vm311, %v307, 1326507024
    %v322 = vsel %vm310, %v304, %v321
    %v323 = vsel %vm309, %v320, %v322
    %v324 = vshll.u32 %v284, 8
    %v325 = vmul.u32.u64.compose %v324, %v323
    %v326 = vextract.low.u32 %v325
    %v327 = vextract.high.u32 %v325
    %v328 = vmul.u32.u64.compose %v324, %v319
    %v329 = vextract.low.u32 %v328
    %v330 = vextract.high.u32 %v328
    %v331 = vmul.u32 %v324, %v315
    %v332 = vadd.s32 %v327, %v329
    %vm333 = vc.u32 %v327, %v329
    %v334 = vadd.s32 %v330, 1
    %v335 = vsel %vm333, %v334, %v330
    %v336 = vadd.s32 %v331, %v335
    %v337 = vadd.s32 %v336, 536870912
    %v338 = vshrl.u32 %v337, 30
    %v339 = vshll.u32 %v338, 30
    %v340 = vsub.s32 %v336, %v339
    %vm341 = vcmp.lt.s32.totalorder %v340, 0
    %v342 = vsub.s32 0, %v340
    %v343 = vsel %vm341, %v342, %v340
    %v344 = vclz %v343
    %v345 = vsub.s32 %v344, 2
    %vm346 = vcmp.gt.s32.totalorder 0, %v345
    %v347 = vsel %vm346, 0, %v345
    %v348 = vsub.s32 32, %v347
    %v349 = vshll.u32 %v340, %v347
    %v350 = vshrl.u32 %v332, %v348
    %v351 = vor.u32 %v349, %v350
    %v352 = vsub.s32 4294967266, %v347
    %v353 = vadd.s32 %v352, 127
    %v354 = vshll.u32 %v353, 23
    %v355 = vor.u32 4788187, %v354
    %v356 = vand.u32 2147483647, %v355
    %v358 = vcvt.s32.f32 %v351
    %v359 = vmul.f32 %v358, %v356
    %v360 = vxor.u32 %v359, 2147483648
    %v361 = vsel %vm278, %v360, %v359
    %v362 = vsub.s32 4, %v338
    %v363 = vsel %vm278, %v362, %v338
    %v364 = vsel %vm277, %v61, %v361
    %v365 = vsel %vm277, 0, %v363
    %v366 = vcosq.f32.pop %v364
    %v367 = vsinq.f32.pop %v364
    %vm368 = vweird.f32 %v61
    %v369 = vadd.s32 %v365, 3
    %v370 = vand.u32 %v369, 3
    %vm371 = vcmp.lt.s32.totalorder %v370, 2
    %vm372 = vcmp.eq.s32.totalorder %v370, 0
    %v373 = vxor.u32 %v367, 2147483648
    %v374 = vsel %vm372, %v366, %v373
    %vm375 = vcmp.eq.s32.totalorder %v370, 2
    %v376 = vxor.u32 %v366, 2147483648
    %v377 = vsel %vm375, %v376, %v367
    %v378 = vsel %vm371, %v374, %v377
    %v379 = vsel %vm368, nan, %v378
    %v380 = vand.u32 2147483647, %v62
    %vm381 = vcmp.le.f32.partialorder %v380, 0.7853982
    %vm382 = vcmp.lt.s32.totalorder %v62, 0
    %v383 = vand.u32 %v62, 2139095040
    %v384 = vshrl.u32 %v383, 23
    %v385 = vsub.s32 %v384, 127
    %v386 = vand.u32 2147483647, %v62
    %v387 = vand.u32 %v386, 8388607
    %v388 = vor.u32 %v387, 8388608
    %v389 = vsub.s32 0, %v388
    %v390 = vadd.s32 %v385, 1
    %vm391 = vcmp.gt.s32.totalorder %v390, 0
    %v392 = vsel %vm391, %v390, 0
    %v393 = vshrl.u32 %v392, 5
    %v394 = vand.u32 %v392, 31
    %v395 = vsub.s32 32, %v394
    %v396 = vshrl.u32 683565275, %v395
    %v397 = vshll.u32 683565275, %v394
    %v398 = vshrl.u32 2475754826, %v395
    %v399 = vor.u32 %v397, %v398
    %v400 = vshll.u32 2475754826, %v394
    %v401 = vshrl.u32 2131351028, %v395
    %v402 = vor.u32 %v400, %v401
    %v403 = vshll.u32 2131351028, %v394
    %v404 = vshrl.u32 2102212464, %v395
    %v405 = vor.u32 %v403, %v404
    %v406 = vshll.u32 2102212464, %v394
    %v407 = vshrl.u32 920167782, %v395
    %v408 = vor.u32 %v406, %v407
    %v409 = vshll.u32 920167782, %v394
    %v410 = vshrl.u32 1326507024, %v395
    %v411 = vor.u32 %v409, %v410
    %vm412 = vcmp.lt.s32.totalorder %v393, 1
    %vm413 = vcmp.lt.s32.totalorder %v393, 2
    %vm414 = vcmp.lt.s32.totalorder %v393, 3
    %vm415 = vcmp.lt.s32.totalorder %v393, 4
    %v416 = vsel %vm412, %v396, %v399
    %v417 = vsel %vm415, %v405, 2102212464
    %v418 = vsel %vm414, %v402, %v417
    %v419 = vsel %vm413, %v416, %v418
    %v420 = vsel %vm412, %v399, %v402
    %v421 = vsel %vm415, %v408, 920167782
    %v422 = vsel %vm414, %v405, %v421
    %v423 = vsel %vm413, %v420, %v422
    %v424 = vsel %vm412, %v402, %v405
    %v425 = vsel %vm415, %v411, 1326507024
    %v426 = vsel %vm414, %v408, %v425
    %v427 = vsel %vm413, %v424, %v426
    %v428 = vshll.u32 %v388, 8
    %v429 = vmul.u32.u64.compose %v428, %v427
    %v430 = vextract.low.u32 %v429
    %v431 = vextract.high.u32 %v429
    %v432 = vmul.u32.u64.compose %v428, %v423
    %v433 = vextract.low.u32 %v432
    %v434 = vextract.high.u32 %v432
    %v435 = vmul.u32 %v428, %v419
    %v436 = vadd.s32 %v431, %v433
    %vm437 = vc.u32 %v431, %v433
    %v438 = vadd.s32 %v434, 1
    %v439 = vsel %vm437, %v438, %v434
    %v440 = vadd.s32 %v435, %v439
    %v441 = vadd.s32 %v440, 536870912
    %v442 = vshrl.u32 %v441, 30
    %v443 = vshll.u32 %v442, 30
    %v444 = vsub.s32 %v440, %v443
    %vm445 = vcmp.lt.s32.totalorder %v444, 0
    %v446 = vsub.s32 0, %v444
    %v447 = vsel %vm445, %v446, %v444
    %v448 = vclz %v447
    %v449 = vsub.s32 %v448, 2
    %vm450 = vcmp.gt.s32.totalorder 0, %v449
    %v451 = vsel %vm450, 0, %v449
    %v452 = vsub.s32 32, %v451
    %v453 = vshll.u32 %v444, %v451
    %v454 = vshrl.u32 %v436, %v452
    %v455 = vor.u32 %v453, %v454
    %v456 = vsub.s32 4294967266, %v451
    %v457 = vadd.s32 %v456, 127
    %v458 = vshll.u32 %v457, 23
    %v459 = vor.u32 4788187, %v458
    %v460 = vand.u32 2147483647, %v459
    %v462 = vcvt.s32.f32 %v455
    %v463 = vmul.f32 %v462, %v460
    %v464 = vxor.u32 %v463, 2147483648
    %v465 = vsel %vm382, %v464, %v463
    %v466 = vsub.s32 4, %v442
    %v467 = vsel %vm382, %v466, %v442
    %v468 = vsel %vm381, %v62, %v465
    %v469 = vsel %vm381, 0, %v467
    %v470 = vcosq.f32.pop %v468
    %v471 = vsinq.f32.pop %v468
    %vm472 = vweird.f32 %v62
    %v473 = vadd.s32 %v469, 3
    %v474 = vand.u32 %v473, 3
    %vm475 = vcmp.lt.s32.totalorder %v474, 2
    %vm476 = vcmp.eq.s32.totalorder %v474, 0
    %v477 = vxor.u32 %v471, 2147483648
    %v478 = vsel %vm476, %v470, %v477
    %vm479 = vcmp.eq.s32.totalorder %v474, 2
    %v480 = vxor.u32 %v470, 2147483648
    %v481 = vsel %vm479, %v480, %v471
    %v482 = vsel %vm475, %v478, %v481
    %v483 = vsel %vm472, nan, %v482
    %v484 = vand.u32 2147483647, %v63
    %vm485 = vcmp.le.f32.partialorder %v484, 0.7853982
    %vm486 = vcmp.lt.s32.totalorder %v63, 0
    %v487 = vand.u32 %v63, 2139095040
    %v488 = vshrl.u32 %v487, 23
    %v489 = vsub.s32 %v488, 127
    %v490 = vand.u32 2147483647, %v63
    %v491 = vand.u32 %v490, 8388607
    %v492 = vor.u32 %v491, 8388608
    %v493 = vsub.s32 0, %v492
    %v494 = vadd.s32 %v489, 1
    %vm495 = vcmp.gt.s32.totalorder %v494, 0
    %v496 = vsel %vm495, %v494, 0
    %v497 = vshrl.u32 %v496, 5
    %v498 = vand.u32 %v496, 31
    %v499 = vsub.s32 32, %v498
    %v500 = vshrl.u32 683565275, %v499
    %v501 = vshll.u32 683565275, %v498
    %v502 = vshrl.u32 2475754826, %v499
    %v503 = vor.u32 %v501, %v502
    %v504 = vshll.u32 2475754826, %v498
    %v505 = vshrl.u32 2131351028, %v499
    %v506 = vor.u32 %v504, %v505
    %v507 = vshll.u32 2131351028, %v498
    %v508 = vshrl.u32 2102212464, %v499
    %v509 = vor.u32 %v507, %v508
    %v510 = vshll.u32 2102212464, %v498
    %v511 = vshrl.u32 920167782, %v499
    %v512 = vor.u32 %v510, %v511
    %v513 = vshll.u32 920167782, %v498
    %v514 = vshrl.u32 1326507024, %v499
    %v515 = vor.u32 %v513, %v514
    %vm516 = vcmp.lt.s32.totalorder %v497, 1
    %vm517 = vcmp.lt.s32.totalorder %v497, 2
    %vm518 = vcmp.lt.s32.totalorder %v497, 3
    %vm519 = vcmp.lt.s32.totalorder %v497, 4
    %v520 = vsel %vm516, %v500, %v503
    %v521 = vsel %vm519, %v509, 2102212464
    %v522 = vsel %vm518, %v506, %v521
    %v523 = vsel %vm517, %v520, %v522
    %v524 = vsel %vm516, %v503, %v506
    %v525 = vsel %vm519, %v512, 920167782
    %v526 = vsel %vm518, %v509, %v525
    %v527 = vsel %vm517, %v524, %v526
    %v528 = vsel %vm516, %v506, %v509
    %v529 = vsel %vm519, %v515, 1326507024
    %v530 = vsel %vm518, %v512, %v529
    %v531 = vsel %vm517, %v528, %v530
    %v532 = vshll.u32 %v492, 8
    %v533 = vmul.u32.u64.compose %v532, %v531
    %v534 = vextract.low.u32 %v533
    %v535 = vextract.high.u32 %v533
    %v536 = vmul.u32.u64.compose %v532, %v527
    %v537 = vextract.low.u32 %v536
    %v538 = vextract.high.u32 %v536
    %v539 = vmul.u32 %v532, %v523
    %v540 = vadd.s32 %v535, %v537
    %vm541 = vc.u32 %v535, %v537
    %v542 = vadd.s32 %v538, 1
    %v543 = vsel %vm541, %v542, %v538
    %v544 = vadd.s32 %v539, %v543
    %v545 = vadd.s32 %v544, 536870912
    %v546 = vshrl.u32 %v545, 30
    %v547 = vshll.u32 %v546, 30
    %v548 = vsub.s32 %v544, %v547
    %vm549 = vcmp.lt.s32.totalorder %v548, 0
    %v550 = vsub.s32 0, %v548
    %v551 = vsel %vm549, %v550, %v548
    %v552 = vclz %v551
    %v553 = vsub.s32 %v552, 2
    %vm554 = vcmp.gt.s32.totalorder 0, %v553
    %v555 = vsel %vm554, 0, %v553
    %v556 = vsub.s32 32, %v555
    %v557 = vshll.u32 %v548, %v555
    %v558 = vshrl.u32 %v540, %v556
    %v559 = vor.u32 %v557, %v558
    %v560 = vsub.s32 4294967266, %v555
    %v561 = vadd.s32 %v560, 127
    %v562 = vshll.u32 %v561, 23
    %v563 = vor.u32 4788187, %v562
    %v564 = vand.u32 2147483647, %v563
    %v566 = vcvt.s32.f32 %v559
    %v567 = vmul.f32 %v566, %v564
    %v568 = vxor.u32 %v567, 2147483648
    %v569 = vsel %vm486, %v568, %v567
    %v570 = vsub.s32 4, %v546
    %v571 = vsel %vm486, %v570, %v546
    %v572 = vsel %vm485, %v63, %v569
    %v573 = vsel %vm485, 0, %v571
    %v574 = vcosq.f32.pop %v572
    %v575 = vsinq.f32.pop %v572
    %vm576 = vweird.f32 %v63
    %v577 = vadd.s32 %v573, 3
    %v578 = vand.u32 %v577, 3
    %vm579 = vcmp.lt.s32.totalorder %v578, 2
    %vm580 = vcmp.eq.s32.totalorder %v578, 0
    %v581 = vxor.u32 %v575, 2147483648
    %v582 = vsel %vm580, %v574, %v581
    %vm583 = vcmp.eq.s32.totalorder %v578, 2
    %v584 = vxor.u32 %v574, 2147483648
    %v585 = vsel %vm583, %v584, %v575
    %v586 = vsel %vm579, %v582, %v585
    %v587 = vsel %vm576, nan, %v586
    %v588 = vand.u32 2147483647, %v64
    %vm589 = vcmp.le.f32.partialorder %v588, 0.7853982
    %vm590 = vcmp.lt.s32.totalorder %v64, 0
    %v591 = vand.u32 %v64, 2139095040
    %v592 = vshrl.u32 %v591, 23
    %v593 = vsub.s32 %v592, 127
    %v594 = vand.u32 2147483647, %v64
    %v595 = vand.u32 %v594, 8388607
    %v596 = vor.u32 %v595, 8388608
    %v597 = vsub.s32 0, %v596
    %v598 = vadd.s32 %v593, 1
    %vm599 = vcmp.gt.s32.totalorder %v598, 0
    %v600 = vsel %vm599, %v598, 0
    %v601 = vshrl.u32 %v600, 5
    %v602 = vand.u32 %v600, 31
    %v603 = vsub.s32 32, %v602
    %v604 = vshrl.u32 683565275, %v603
    %v605 = vshll.u32 683565275, %v602
    %v606 = vshrl.u32 2475754826, %v603
    %v607 = vor.u32 %v605, %v606
    %v608 = vshll.u32 2475754826, %v602
    %v609 = vshrl.u32 2131351028, %v603
    %v610 = vor.u32 %v608, %v609
    %v611 = vshll.u32 2131351028, %v602
    %v612 = vshrl.u32 2102212464, %v603
    %v613 = vor.u32 %v611, %v612
    %v614 = vshll.u32 2102212464, %v602
    %v615 = vshrl.u32 920167782, %v603
    %v616 = vor.u32 %v614, %v615
    %v617 = vshll.u32 920167782, %v602
    %v618 = vshrl.u32 1326507024, %v603
    %v619 = vor.u32 %v617, %v618
    %vm620 = vcmp.lt.s32.totalorder %v601, 1
    %vm621 = vcmp.lt.s32.totalorder %v601, 2
    %vm622 = vcmp.lt.s32.totalorder %v601, 3
    %vm623 = vcmp.lt.s32.totalorder %v601, 4
    %v624 = vsel %vm620, %v604, %v607
    %v625 = vsel %vm623, %v613, 2102212464
    %v626 = vsel %vm622, %v610, %v625
    %v627 = vsel %vm621, %v624, %v626
    %v628 = vsel %vm620, %v607, %v610
    %v629 = vsel %vm623, %v616, 920167782
    %v630 = vsel %vm622, %v613, %v629
    %v631 = vsel %vm621, %v628, %v630
    %v632 = vsel %vm620, %v610, %v613
    %v633 = vsel %vm623, %v619, 1326507024
    %v634 = vsel %vm622, %v616, %v633
    %v635 = vsel %vm621, %v632, %v634
    %v636 = vshll.u32 %v596, 8
    %v637 = vmul.u32.u64.compose %v636, %v635
    %v638 = vextract.low.u32 %v637
    %v639 = vextract.high.u32 %v637
    %v640 = vmul.u32.u64.compose %v636, %v631
    %v641 = vextract.low.u32 %v640
    %v642 = vextract.high.u32 %v640
    %v643 = vmul.u32 %v636, %v627
    %v644 = vadd.s32 %v639, %v641
    %vm645 = vc.u32 %v639, %v641
    %v646 = vadd.s32 %v642, 1
    %v647 = vsel %vm645, %v646, %v642
    %v648 = vadd.s32 %v643, %v647
    %v649 = vadd.s32 %v648, 536870912
    %v650 = vshrl.u32 %v649, 30
    %v651 = vshll.u32 %v650, 30
    %v652 = vsub.s32 %v648, %v651
    %vm653 = vcmp.lt.s32.totalorder %v652, 0
    %v654 = vsub.s32 0, %v652
    %v655 = vsel %vm653, %v654, %v652
    %v656 = vclz %v655
    %v657 = vsub.s32 %v656, 2
    %vm658 = vcmp.gt.s32.totalorder 0, %v657
    %v659 = vsel %vm658, 0, %v657
    %v660 = vsub.s32 32, %v659
    %v661 = vshll.u32 %v652, %v659
    %v662 = vshrl.u32 %v644, %v660
    %v663 = vor.u32 %v661, %v662
    %v664 = vsub.s32 4294967266, %v659
    %v665 = vadd.s32 %v664, 127
    %v666 = vshll.u32 %v665, 23
    %v667 = vor.u32 4788187, %v666
    %v668 = vand.u32 2147483647, %v667
    %v670 = vcvt.s32.f32 %v663
    %v671 = vmul.f32 %v670, %v668
    %v672 = vxor.u32 %v671, 2147483648
    %v673 = vsel %vm590, %v672, %v671
    %v674 = vsub.s32 4, %v650
    %v675 = vsel %vm590, %v674, %v650
    %v676 = vsel %vm589, %v64, %v673
    %v677 = vsel %vm589, 0, %v675
    %v678 = vcosq.f32.pop %v676
    %v679 = vsinq.f32.pop %v676
    %vm680 = vweird.f32 %v64
    %v681 = vadd.s32 %v677, 3
    %v682 = vand.u32 %v681, 3
    %vm683 = vcmp.lt.s32.totalorder %v682, 2
    %vm684 = vcmp.eq.s32.totalorder %v682, 0
    %v685 = vxor.u32 %v679, 2147483648
    %v686 = vsel %vm684, %v678, %v685
    %vm687 = vcmp.eq.s32.totalorder %v682, 2
    %v688 = vxor.u32 %v678, 2147483648
    %v689 = vsel %vm687, %v688, %v679
    %v690 = vsel %vm683, %v686, %v689
    %v691 = vsel %vm680, nan, %v690
    %v692 = vand.u32 2147483647, %v65
    %vm693 = vcmp.le.f32.partialorder %v692, 0.7853982
    %vm694 = vcmp.lt.s32.totalorder %v65, 0
    %v695 = vand.u32 %v65, 2139095040
    %v696 = vshrl.u32 %v695, 23
    %v697 = vsub.s32 %v696, 127
    %v698 = vand.u32 2147483647, %v65
    %v699 = vand.u32 %v698, 8388607
    %v700 = vor.u32 %v699, 8388608
    %v701 = vsub.s32 0, %v700
    %v702 = vadd.s32 %v697, 1
    %vm703 = vcmp.gt.s32.totalorder %v702, 0
    %v704 = vsel %vm703, %v702, 0
    %v705 = vshrl.u32 %v704, 5
    %v706 = vand.u32 %v704, 31
    %v707 = vsub.s32 32, %v706
    %v708 = vshrl.u32 683565275, %v707
    %v709 = vshll.u32 683565275, %v706
    %v710 = vshrl.u32 2475754826, %v707
    %v711 = vor.u32 %v709, %v710
    %v712 = vshll.u32 2475754826, %v706
    %v713 = vshrl.u32 2131351028, %v707
    %v714 = vor.u32 %v712, %v713
    %v715 = vshll.u32 2131351028, %v706
    %v716 = vshrl.u32 2102212464, %v707
    %v717 = vor.u32 %v715, %v716
    %v718 = vshll.u32 2102212464, %v706
    %v719 = vshrl.u32 920167782, %v707
    %v720 = vor.u32 %v718, %v719
    %v721 = vshll.u32 920167782, %v706
    %v722 = vshrl.u32 1326507024, %v707
    %v723 = vor.u32 %v721, %v722
    %vm724 = vcmp.lt.s32.totalorder %v705, 1
    %vm725 = vcmp.lt.s32.totalorder %v705, 2
    %vm726 = vcmp.lt.s32.totalorder %v705, 3
    %vm727 = vcmp.lt.s32.totalorder %v705, 4
    %v728 = vsel %vm724, %v708, %v711
    %v729 = vsel %vm727, %v717, 2102212464
    %v730 = vsel %vm726, %v714, %v729
    %v731 = vsel %vm725, %v728, %v730
    %v732 = vsel %vm724, %v711, %v714
    %v733 = vsel %vm727, %v720, 920167782
    %v734 = vsel %vm726, %v717, %v733
    %v735 = vsel %vm725, %v732, %v734
    %v736 = vsel %vm724, %v714, %v717
    %v737 = vsel %vm727, %v723, 1326507024
    %v738 = vsel %vm726, %v720, %v737
    %v739 = vsel %vm725, %v736, %v738
    %v740 = vshll.u32 %v700, 8
    %v741 = vmul.u32.u64.compose %v740, %v739
    %v742 = vextract.low.u32 %v741
    %v743 = vextract.high.u32 %v741
    %v744 = vmul.u32.u64.compose %v740, %v735
    %v745 = vextract.low.u32 %v744
    %v746 = vextract.high.u32 %v744
    %v747 = vmul.u32 %v740, %v731
    %v748 = vadd.s32 %v743, %v745
    %vm749 = vc.u32 %v743, %v745
    %v750 = vadd.s32 %v746, 1
    %v751 = vsel %vm749, %v750, %v746
    %v752 = vadd.s32 %v747, %v751
    %v753 = vadd.s32 %v752, 536870912
    %v754 = vshrl.u32 %v753, 30
    %v755 = vshll.u32 %v754, 30
    %v756 = vsub.s32 %v752, %v755
    %vm757 = vcmp.lt.s32.totalorder %v756, 0
    %v758 = vsub.s32 0, %v756
    %v759 = vsel %vm757, %v758, %v756
    %v760 = vclz %v759
    %v761 = vsub.s32 %v760, 2
    %vm762 = vcmp.gt.s32.totalorder 0, %v761
    %v763 = vsel %vm762, 0, %v761
    %v764 = vsub.s32 32, %v763
    %v765 = vshll.u32 %v756, %v763
    %v766 = vshrl.u32 %v748, %v764
    %v767 = vor.u32 %v765, %v766
    %v768 = vsub.s32 4294967266, %v763
    %v769 = vadd.s32 %v768, 127
    %v770 = vshll.u32 %v769, 23
    %v771 = vor.u32 4788187, %v770
    %v772 = vand.u32 2147483647, %v771
    %v774 = vcvt.s32.f32 %v767
    %v775 = vmul.f32 %v774, %v772
    %v776 = vxor.u32 %v775, 2147483648
    %v777 = vsel %vm694, %v776, %v775
    %v778 = vsub.s32 4, %v754
    %v779 = vsel %vm694, %v778, %v754
    %v780 = vsel %vm693, %v65, %v777
    %v781 = vsel %vm693, 0, %v779
    %v782 = vcosq.f32.pop %v780
    %v783 = vsinq.f32.pop %v780
    %vm784 = vweird.f32 %v65
    %v785 = vadd.s32 %v781, 3
    %v786 = vand.u32 %v785, 3
    %vm787 = vcmp.lt.s32.totalorder %v786, 2
    %vm788 = vcmp.eq.s32.totalorder %v786, 0
    %v789 = vxor.u32 %v783, 2147483648
    %v790 = vsel %vm788, %v782, %v789
    %vm791 = vcmp.eq.s32.totalorder %v786, 2
    %v792 = vxor.u32 %v782, 2147483648
    %v793 = vsel %vm791, %v792, %v783
    %v794 = vsel %vm787, %v790, %v793
    %v795 = vsel %vm784, nan, %v794
    %v796 = vand.u32 2147483647, %v66
    %vm797 = vcmp.le.f32.partialorder %v796, 0.7853982
    %vm798 = vcmp.lt.s32.totalorder %v66, 0
    %v799 = vand.u32 %v66, 2139095040
    %v800 = vshrl.u32 %v799, 23
    %v801 = vsub.s32 %v800, 127
    %v802 = vand.u32 2147483647, %v66
    %v803 = vand.u32 %v802, 8388607
    %v804 = vor.u32 %v803, 8388608
    %v805 = vsub.s32 0, %v804
    %v806 = vadd.s32 %v801, 1
    %vm807 = vcmp.gt.s32.totalorder %v806, 0
    %v808 = vsel %vm807, %v806, 0
    %v809 = vshrl.u32 %v808, 5
    %v810 = vand.u32 %v808, 31
    %v811 = vsub.s32 32, %v810
    %v812 = vshrl.u32 683565275, %v811
    %v813 = vshll.u32 683565275, %v810
    %v814 = vshrl.u32 2475754826, %v811
    %v815 = vor.u32 %v813, %v814
    %v816 = vshll.u32 2475754826, %v810
    %v817 = vshrl.u32 2131351028, %v811
    %v818 = vor.u32 %v816, %v817
    %v819 = vshll.u32 2131351028, %v810
    %v820 = vshrl.u32 2102212464, %v811
    %v821 = vor.u32 %v819, %v820
    %v822 = vshll.u32 2102212464, %v810
    %v823 = vshrl.u32 920167782, %v811
    %v824 = vor.u32 %v822, %v823
    %v825 = vshll.u32 920167782, %v810
    %v826 = vshrl.u32 1326507024, %v811
    %v827 = vor.u32 %v825, %v826
    %vm828 = vcmp.lt.s32.totalorder %v809, 1
    %vm829 = vcmp.lt.s32.totalorder %v809, 2
    %vm830 = vcmp.lt.s32.totalorder %v809, 3
    %vm831 = vcmp.lt.s32.totalorder %v809, 4
    %v832 = vsel %vm828, %v812, %v815
    %v833 = vsel %vm831, %v821, 2102212464
    %v834 = vsel %vm830, %v818, %v833
    %v835 = vsel %vm829, %v832, %v834
    %v836 = vsel %vm828, %v815, %v818
    %v837 = vsel %vm831, %v824, 920167782
    %v838 = vsel %vm830, %v821, %v837
    %v839 = vsel %vm829, %v836, %v838
    %v840 = vsel %vm828, %v818, %v821
    %v841 = vsel %vm831, %v827, 1326507024
    %v842 = vsel %vm830, %v824, %v841
    %v843 = vsel %vm829, %v840, %v842
    %v844 = vshll.u32 %v804, 8
    %v845 = vmul.u32.u64.compose %v844, %v843
    %v846 = vextract.low.u32 %v845
    %v847 = vextract.high.u32 %v845
    %v848 = vmul.u32.u64.compose %v844, %v839
    %v849 = vextract.low.u32 %v848
    %v850 = vextract.high.u32 %v848
    %v851 = vmul.u32 %v844, %v835
    %v852 = vadd.s32 %v847, %v849
    %vm853 = vc.u32 %v847, %v849
    %v854 = vadd.s32 %v850, 1
    %v855 = vsel %vm853, %v854, %v850
    %v856 = vadd.s32 %v851, %v855
    %v857 = vadd.s32 %v856, 536870912
    %v858 = vshrl.u32 %v857, 30
    %v859 = vshll.u32 %v858, 30
    %v860 = vsub.s32 %v856, %v859
    %vm861 = vcmp.lt.s32.totalorder %v860, 0
    %v862 = vsub.s32 0, %v860
    %v863 = vsel %vm861, %v862, %v860
    %v864 = vclz %v863
    %v865 = vsub.s32 %v864, 2
    %vm866 = vcmp.gt.s32.totalorder 0, %v865
    %v867 = vsel %vm866, 0, %v865
    %v868 = vsub.s32 32, %v867
    %v869 = vshll.u32 %v860, %v867
    %v870 = vshrl.u32 %v852, %v868
    %v871 = vor.u32 %v869, %v870
    %v872 = vsub.s32 4294967266, %v867
    %v873 = vadd.s32 %v872, 127
    %v874 = vshll.u32 %v873, 23
    %v875 = vor.u32 4788187, %v874
    %v876 = vand.u32 2147483647, %v875
    %v878 = vcvt.s32.f32 %v871
    %v879 = vmul.f32 %v878, %v876
    %v880 = vxor.u32 %v879, 2147483648
    %v881 = vsel %vm798, %v880, %v879
    %v882 = vsub.s32 4, %v858
    %v883 = vsel %vm798, %v882, %v858
    %v884 = vsel %vm797, %v66, %v881
    %v885 = vsel %vm797, 0, %v883
    %v886 = vcosq.f32.pop %v884
    %v887 = vsinq.f32.pop %v884
    %vm888 = vweird.f32 %v66
    %v889 = vadd.s32 %v885, 3
    %v890 = vand.u32 %v889, 3
    %vm891 = vcmp.lt.s32.totalorder %v890, 2
    %vm892 = vcmp.eq.s32.totalorder %v890, 0
    %v893 = vxor.u32 %v887, 2147483648
    %v894 = vsel %vm892, %v886, %v893
    %vm895 = vcmp.eq.s32.totalorder %v890, 2
    %v896 = vxor.u32 %v886, 2147483648
    %v897 = vsel %vm895, %v896, %v887
    %v898 = vsel %vm891, %v894, %v897
    %v899 = vsel %vm888, nan, %v898
    %v900 = vand.u32 2147483647, %v59
    %vm901 = vcmp.le.f32.partialorder %v900, 0.7853982
    %vm902 = vcmp.lt.s32.totalorder %v59, 0
    %v903 = vand.u32 %v59, 2139095040
    %v904 = vshrl.u32 %v903, 23
    %v905 = vsub.s32 %v904, 127
    %v906 = vand.u32 2147483647, %v59
    %v907 = vand.u32 %v906, 8388607
    %v908 = vor.u32 %v907, 8388608
    %v909 = vsub.s32 0, %v908
    %v910 = vadd.s32 %v905, 1
    %vm911 = vcmp.gt.s32.totalorder %v910, 0
    %v912 = vsel %vm911, %v910, 0
    %v913 = vshrl.u32 %v912, 5
    %v914 = vand.u32 %v912, 31
    %v915 = vsub.s32 32, %v914
    %v916 = vshrl.u32 683565275, %v915
    %v917 = vshll.u32 683565275, %v914
    %v918 = vshrl.u32 2475754826, %v915
    %v919 = vor.u32 %v917, %v918
    %v920 = vshll.u32 2475754826, %v914
    %v921 = vshrl.u32 2131351028, %v915
    %v922 = vor.u32 %v920, %v921
    %v923 = vshll.u32 2131351028, %v914
    %v924 = vshrl.u32 2102212464, %v915
    %v925 = vor.u32 %v923, %v924
    %v926 = vshll.u32 2102212464, %v914
    %v927 = vshrl.u32 920167782, %v915
    %v928 = vor.u32 %v926, %v927
    %v929 = vshll.u32 920167782, %v914
    %v930 = vshrl.u32 1326507024, %v915
    %v931 = vor.u32 %v929, %v930
    %vm932 = vcmp.lt.s32.totalorder %v913, 1
    %vm933 = vcmp.lt.s32.totalorder %v913, 2
    %vm934 = vcmp.lt.s32.totalorder %v913, 3
    %vm935 = vcmp.lt.s32.totalorder %v913, 4
    %v936 = vsel %vm932, %v916, %v919
    %v937 = vsel %vm935, %v925, 2102212464
    %v938 = vsel %vm934, %v922, %v937
    %v939 = vsel %vm933, %v936, %v938
    %v940 = vsel %vm932, %v919, %v922
    %v941 = vsel %vm935, %v928, 920167782
    %v942 = vsel %vm934, %v925, %v941
    %v943 = vsel %vm933, %v940, %v942
    %v944 = vsel %vm932, %v922, %v925
    %v945 = vsel %vm935, %v931, 1326507024
    %v946 = vsel %vm934, %v928, %v945
    %v947 = vsel %vm933, %v944, %v946
    %v948 = vshll.u32 %v908, 8
    %v949 = vmul.u32.u64.compose %v948, %v947
    %v950 = vextract.low.u32 %v949
    %v951 = vextract.high.u32 %v949
    %v952 = vmul.u32.u64.compose %v948, %v943
    %v953 = vextract.low.u32 %v952
    %v954 = vextract.high.u32 %v952
    %v955 = vmul.u32 %v948, %v939
    %v956 = vadd.s32 %v951, %v953
    %vm957 = vc.u32 %v951, %v953
    %v958 = vadd.s32 %v954, 1
    %v959 = vsel %vm957, %v958, %v954
    %v960 = vadd.s32 %v955, %v959
    %v961 = vadd.s32 %v960, 536870912
    %v962 = vshrl.u32 %v961, 30
    %v963 = vshll.u32 %v962, 30
    %v964 = vsub.s32 %v960, %v963
    %vm965 = vcmp.lt.s32.totalorder %v964, 0
    %v966 = vsub.s32 0, %v964
    %v967 = vsel %vm965, %v966, %v964
    %v968 = vclz %v967
    %v969 = vsub.s32 %v968, 2
    %vm970 = vcmp.gt.s32.totalorder 0, %v969
    %v971 = vsel %vm970, 0, %v969
    %v972 = vsub.s32 32, %v971
    %v973 = vshll.u32 %v964, %v971
    %v974 = vshrl.u32 %v956, %v972
    %v975 = vor.u32 %v973, %v974
    %v976 = vsub.s32 4294967266, %v971
    %v977 = vadd.s32 %v976, 127
    %v978 = vshll.u32 %v977, 23
    %v979 = vor.u32 4788187, %v978
    %v980 = vand.u32 2147483647, %v979
    %v982 = vcvt.s32.f32 %v975
    %v983 = vmul.f32 %v982, %v980
    %v984 = vxor.u32 %v983, 2147483648
    %v985 = vsel %vm902, %v984, %v983
    %v986 = vsub.s32 4, %v962
    %v987 = vsel %vm902, %v986, %v962
    %v988 = vsel %vm901, %v59, %v985
    %v989 = vsel %vm901, 0, %v987
    %v990 = vcosq.f32.pop %v988
    %v991 = vsinq.f32.pop %v988
    %vm992 = vweird.f32 %v59
    %v993 = vand.u32 %v989, 3
    %vm994 = vcmp.lt.s32.totalorder %v993, 2
    %vm995 = vcmp.eq.s32.totalorder %v993, 0
    %v996 = vxor.u32 %v991, 2147483648
    %v997 = vsel %vm995, %v990, %v996
    %vm998 = vcmp.eq.s32.totalorder %v993, 2
    %v999 = vxor.u32 %v990, 2147483648
    %v1000 = vsel %vm998, %v999, %v991
    %v1001 = vsel %vm994, %v997, %v1000
    %v1002 = vsel %vm992, nan, %v1001
    %v1003 = vand.u32 2147483647, %v60
    %vm1004 = vcmp.le.f32.partialorder %v1003, 0.7853982
    %vm1005 = vcmp.lt.s32.totalorder %v60, 0
    %v1006 = vand.u32 %v60, 2139095040
    %v1007 = vshrl.u32 %v1006, 23
    %v1008 = vsub.s32 %v1007, 127
    %v1009 = vand.u32 2147483647, %v60
    %v1010 = vand.u32 %v1009, 8388607
    %v1011 = vor.u32 %v1010, 8388608
    %v1012 = vsub.s32 0, %v1011
    %v1013 = vadd.s32 %v1008, 1
    %vm1014 = vcmp.gt.s32.totalorder %v1013, 0
    %v1015 = vsel %vm1014, %v1013, 0
    %v1016 = vshrl.u32 %v1015, 5
    %v1017 = vand.u32 %v1015, 31
    %v1018 = vsub.s32 32, %v1017
    %v1019 = vshrl.u32 683565275, %v1018
    %v1020 = vshll.u32 683565275, %v1017
    %v1021 = vshrl.u32 2475754826, %v1018
    %v1022 = vor.u32 %v1020, %v1021
    %v1023 = vshll.u32 2475754826, %v1017
    %v1024 = vshrl.u32 2131351028, %v1018
    %v1025 = vor.u32 %v1023, %v1024
    %v1026 = vshll.u32 2131351028, %v1017
    %v1027 = vshrl.u32 2102212464, %v1018
    %v1028 = vor.u32 %v1026, %v1027
    %v1029 = vshll.u32 2102212464, %v1017
    %v1030 = vshrl.u32 920167782, %v1018
    %v1031 = vor.u32 %v1029, %v1030
    %v1032 = vshll.u32 920167782, %v1017
    %v1033 = vshrl.u32 1326507024, %v1018
    %v1034 = vor.u32 %v1032, %v1033
    %vm1035 = vcmp.lt.s32.totalorder %v1016, 1
    %vm1036 = vcmp.lt.s32.totalorder %v1016, 2
    %vm1037 = vcmp.lt.s32.totalorder %v1016, 3
    %vm1038 = vcmp.lt.s32.totalorder %v1016, 4
    %v1039 = vsel %vm1035, %v1019, %v1022
    %v1040 = vsel %vm1038, %v1028, 2102212464
    %v1041 = vsel %vm1037, %v1025, %v1040
    %v1042 = vsel %vm1036, %v1039, %v1041
    %v1043 = vsel %vm1035, %v1022, %v1025
    %v1044 = vsel %vm1038, %v1031, 920167782
    %v1045 = vsel %vm1037, %v1028, %v1044
    %v1046 = vsel %vm1036, %v1043, %v1045
    %v1047 = vsel %vm1035, %v1025, %v1028
    %v1048 = vsel %vm1038, %v1034, 1326507024
    %v1049 = vsel %vm1037, %v1031, %v1048
    %v1050 = vsel %vm1036, %v1047, %v1049
    %v1051 = vshll.u32 %v1011, 8
    %v1052 = vmul.u32.u64.compose %v1051, %v1050
    %v1053 = vextract.low.u32 %v1052
    %v1054 = vextract.high.u32 %v1052
    %v1055 = vmul.u32.u64.compose %v1051, %v1046
    %v1056 = vextract.low.u32 %v1055
    %v1057 = vextract.high.u32 %v1055
    %v1058 = vmul.u32 %v1051, %v1042
    %v1059 = vadd.s32 %v1054, %v1056
    %vm1060 = vc.u32 %v1054, %v1056
    %v1061 = vadd.s32 %v1057, 1
    %v1062 = vsel %vm1060, %v1061, %v1057
    %v1063 = vadd.s32 %v1058, %v1062
    %v1064 = vadd.s32 %v1063, 536870912
    %v1065 = vshrl.u32 %v1064, 30
    %v1066 = vshll.u32 %v1065, 30
    %v1067 = vsub.s32 %v1063, %v1066
    %vm1068 = vcmp.lt.s32.totalorder %v1067, 0
    %v1069 = vsub.s32 0, %v1067
    %v1070 = vsel %vm1068, %v1069, %v1067
    %v1071 = vclz %v1070
    %v1072 = vsub.s32 %v1071, 2
    %vm1073 = vcmp.gt.s32.totalorder 0, %v1072
    %v1074 = vsel %vm1073, 0, %v1072
    %v1075 = vsub.s32 32, %v1074
    %v1076 = vshll.u32 %v1067, %v1074
    %v1077 = vshrl.u32 %v1059, %v1075
    %v1078 = vor.u32 %v1076, %v1077
    %v1079 = vsub.s32 4294967266, %v1074
    %v1080 = vadd.s32 %v1079, 127
    %v1081 = vshll.u32 %v1080, 23
    %v1082 = vor.u32 4788187, %v1081
    %v1083 = vand.u32 2147483647, %v1082
    %v1085 = vcvt.s32.f32 %v1078
    %v1086 = vmul.f32 %v1085, %v1083
    %v1087 = vxor.u32 %v1086, 2147483648
    %v1088 = vsel %vm1005, %v1087, %v1086
    %v1089 = vsub.s32 4, %v1065
    %v1090 = vsel %vm1005, %v1089, %v1065
    %v1091 = vsel %vm1004, %v60, %v1088
    %v1092 = vsel %vm1004, 0, %v1090
    %v1093 = vcosq.f32.pop %v1091
    %v1094 = vsinq.f32.pop %v1091
    %vm1095 = vweird.f32 %v60
    %v1096 = vand.u32 %v1092, 3
    %vm1097 = vcmp.lt.s32.totalorder %v1096, 2
    %vm1098 = vcmp.eq.s32.totalorder %v1096, 0
    %v1099 = vxor.u32 %v1094, 2147483648
    %v1100 = vsel %vm1098, %v1093, %v1099
    %vm1101 = vcmp.eq.s32.totalorder %v1096, 2
    %v1102 = vxor.u32 %v1093, 2147483648
    %v1103 = vsel %vm1101, %v1102, %v1094
    %v1104 = vsel %vm1097, %v1100, %v1103
    %v1105 = vsel %vm1095, nan, %v1104
    %v1106 = vand.u32 2147483647, %v61
    %vm1107 = vcmp.le.f32.partialorder %v1106, 0.7853982
    %vm1108 = vcmp.lt.s32.totalorder %v61, 0
    %v1109 = vand.u32 %v61, 2139095040
    %v1110 = vshrl.u32 %v1109, 23
    %v1111 = vsub.s32 %v1110, 127
    %v1112 = vand.u32 2147483647, %v61
    %v1113 = vand.u32 %v1112, 8388607
    %v1114 = vor.u32 %v1113, 8388608
    %v1115 = vsub.s32 0, %v1114
    %v1116 = vadd.s32 %v1111, 1
    %vm1117 = vcmp.gt.s32.totalorder %v1116, 0
    %v1118 = vsel %vm1117, %v1116, 0
    %v1119 = vshrl.u32 %v1118, 5
    %v1120 = vand.u32 %v1118, 31
    %v1121 = vsub.s32 32, %v1120
    %v1122 = vshrl.u32 683565275, %v1121
    %v1123 = vshll.u32 683565275, %v1120
    %v1124 = vshrl.u32 2475754826, %v1121
    %v1125 = vor.u32 %v1123, %v1124
    %v1126 = vshll.u32 2475754826, %v1120
    %v1127 = vshrl.u32 2131351028, %v1121
    %v1128 = vor.u32 %v1126, %v1127
    %v1129 = vshll.u32 2131351028, %v1120
    %v1130 = vshrl.u32 2102212464, %v1121
    %v1131 = vor.u32 %v1129, %v1130
    %v1132 = vshll.u32 2102212464, %v1120
    %v1133 = vshrl.u32 920167782, %v1121
    %v1134 = vor.u32 %v1132, %v1133
    %v1135 = vshll.u32 920167782, %v1120
    %v1136 = vshrl.u32 1326507024, %v1121
    %v1137 = vor.u32 %v1135, %v1136
    %vm1138 = vcmp.lt.s32.totalorder %v1119, 1
    %vm1139 = vcmp.lt.s32.totalorder %v1119, 2
    %vm1140 = vcmp.lt.s32.totalorder %v1119, 3
    %vm1141 = vcmp.lt.s32.totalorder %v1119, 4
    %v1142 = vsel %vm1138, %v1122, %v1125
    %v1143 = vsel %vm1141, %v1131, 2102212464
    %v1144 = vsel %vm1140, %v1128, %v1143
    %v1145 = vsel %vm1139, %v1142, %v1144
    %v1146 = vsel %vm1138, %v1125, %v1128
    %v1147 = vsel %vm1141, %v1134, 920167782
    %v1148 = vsel %vm1140, %v1131, %v1147
    %v1149 = vsel %vm1139, %v1146, %v1148
    %v1150 = vsel %vm1138, %v1128, %v1131
    %v1151 = vsel %vm1141, %v1137, 1326507024
    %v1152 = vsel %vm1140, %v1134, %v1151
    %v1153 = vsel %vm1139, %v1150, %v1152
    %v1154 = vshll.u32 %v1114, 8
    %v1155 = vmul.u32.u64.compose %v1154, %v1153
    %v1156 = vextract.low.u32 %v1155
    %v1157 = vextract.high.u32 %v1155
    %v1158 = vmul.u32.u64.compose %v1154, %v1149
    %v1159 = vextract.low.u32 %v1158
    %v1160 = vextract.high.u32 %v1158
    %v1161 = vmul.u32 %v1154, %v1145
    %v1162 = vadd.s32 %v1157, %v1159
    %vm1163 = vc.u32 %v1157, %v1159
    %v1164 = vadd.s32 %v1160, 1
    %v1165 = vsel %vm1163, %v1164, %v1160
    %v1166 = vadd.s32 %v1161, %v1165
    %v1167 = vadd.s32 %v1166, 536870912
    %v1168 = vshrl.u32 %v1167, 30
    %v1169 = vshll.u32 %v1168, 30
    %v1170 = vsub.s32 %v1166, %v1169
    %vm1171 = vcmp.lt.s32.totalorder %v1170, 0
    %v1172 = vsub.s32 0, %v1170
    %v1173 = vsel %vm1171, %v1172, %v1170
    %v1174 = vclz %v1173
    %v1175 = vsub.s32 %v1174, 2
    %vm1176 = vcmp.gt.s32.totalorder 0, %v1175
    %v1177 = vsel %vm1176, 0, %v1175
    %v1178 = vsub.s32 32, %v1177
    %v1179 = vshll.u32 %v1170, %v1177
    %v1180 = vshrl.u32 %v1162, %v1178
    %v1181 = vor.u32 %v1179, %v1180
    %v1182 = vsub.s32 4294967266, %v1177
    %v1183 = vadd.s32 %v1182, 127
    %v1184 = vshll.u32 %v1183, 23
    %v1185 = vor.u32 4788187, %v1184
    %v1186 = vand.u32 2147483647, %v1185
    %v1188 = vcvt.s32.f32 %v1181
    %v1189 = vmul.f32 %v1188, %v1186
    %v1190 = vxor.u32 %v1189, 2147483648
    %v1191 = vsel %vm1108, %v1190, %v1189
    %v1192 = vsub.s32 4, %v1168
    %v1193 = vsel %vm1108, %v1192, %v1168
    %v1194 = vsel %vm1107, %v61, %v1191
    %v1195 = vsel %vm1107, 0, %v1193
    %v1196 = vcosq.f32.pop %v1194
    %v1197 = vsinq.f32.pop %v1194
    %vm1198 = vweird.f32 %v61
    %v1199 = vand.u32 %v1195, 3
    %vm1200 = vcmp.lt.s32.totalorder %v1199, 2
    %vm1201 = vcmp.eq.s32.totalorder %v1199, 0
    %v1202 = vxor.u32 %v1197, 2147483648
    %v1203 = vsel %vm1201, %v1196, %v1202
    %vm1204 = vcmp.eq.s32.totalorder %v1199, 2
    %v1205 = vxor.u32 %v1196, 2147483648
    %v1206 = vsel %vm1204, %v1205, %v1197
    %v1207 = vsel %vm1200, %v1203, %v1206
    %v1208 = vsel %vm1198, nan, %v1207
    %v1209 = vand.u32 2147483647, %v62
    %vm1210 = vcmp.le.f32.partialorder %v1209, 0.7853982
    %vm1211 = vcmp.lt.s32.totalorder %v62, 0
    %v1212 = vand.u32 %v62, 2139095040
    %v1213 = vshrl.u32 %v1212, 23
    %v1214 = vsub.s32 %v1213, 127
    %v1215 = vand.u32 2147483647, %v62
    %v1216 = vand.u32 %v1215, 8388607
    %v1217 = vor.u32 %v1216, 8388608
    %v1218 = vsub.s32 0, %v1217
    %v1219 = vadd.s32 %v1214, 1
    %vm1220 = vcmp.gt.s32.totalorder %v1219, 0
    %v1221 = vsel %vm1220, %v1219, 0
    %v1222 = vshrl.u32 %v1221, 5
    %v1223 = vand.u32 %v1221, 31
    %v1224 = vsub.s32 32, %v1223
    %v1225 = vshrl.u32 683565275, %v1224
    %v1226 = vshll.u32 683565275, %v1223
    %v1227 = vshrl.u32 2475754826, %v1224
    %v1228 = vor.u32 %v1226, %v1227
    %v1229 = vshll.u32 2475754826, %v1223
    %v1230 = vshrl.u32 2131351028, %v1224
    %v1231 = vor.u32 %v1229, %v1230
    %v1232 = vshll.u32 2131351028, %v1223
    %v1233 = vshrl.u32 2102212464, %v1224
    %v1234 = vor.u32 %v1232, %v1233
    %v1235 = vshll.u32 2102212464, %v1223
    %v1236 = vshrl.u32 920167782, %v1224
    %v1237 = vor.u32 %v1235, %v1236
    %v1238 = vshll.u32 920167782, %v1223
    %v1239 = vshrl.u32 1326507024, %v1224
    %v1240 = vor.u32 %v1238, %v1239
    %vm1241 = vcmp.lt.s32.totalorder %v1222, 1
    %vm1242 = vcmp.lt.s32.totalorder %v1222, 2
    %vm1243 = vcmp.lt.s32.totalorder %v1222, 3
    %vm1244 = vcmp.lt.s32.totalorder %v1222, 4
    %v1245 = vsel %vm1241, %v1225, %v1228
    %v1246 = vsel %vm1244, %v1234, 2102212464
    %v1247 = vsel %vm1243, %v1231, %v1246
    %v1248 = vsel %vm1242, %v1245, %v1247
    %v1249 = vsel %vm1241, %v1228, %v1231
    %v1250 = vsel %vm1244, %v1237, 920167782
    %v1251 = vsel %vm1243, %v1234, %v1250
    %v1252 = vsel %vm1242, %v1249, %v1251
    %v1253 = vsel %vm1241, %v1231, %v1234
    %v1254 = vsel %vm1244, %v1240, 1326507024
    %v1255 = vsel %vm1243, %v1237, %v1254
    %v1256 = vsel %vm1242, %v1253, %v1255
    %v1257 = vshll.u32 %v1217, 8
    %v1258 = vmul.u32.u64.compose %v1257, %v1256
    %v1259 = vextract.low.u32 %v1258
    %v1260 = vextract.high.u32 %v1258
    %v1261 = vmul.u32.u64.compose %v1257, %v1252
    %v1262 = vextract.low.u32 %v1261
    %v1263 = vextract.high.u32 %v1261
    %v1264 = vmul.u32 %v1257, %v1248
    %v1265 = vadd.s32 %v1260, %v1262
    %vm1266 = vc.u32 %v1260, %v1262
    %v1267 = vadd.s32 %v1263, 1
    %v1268 = vsel %vm1266, %v1267, %v1263
    %v1269 = vadd.s32 %v1264, %v1268
    %v1270 = vadd.s32 %v1269, 536870912
    %v1271 = vshrl.u32 %v1270, 30
    %v1272 = vshll.u32 %v1271, 30
    %v1273 = vsub.s32 %v1269, %v1272
    %vm1274 = vcmp.lt.s32.totalorder %v1273, 0
    %v1275 = vsub.s32 0, %v1273
    %v1276 = vsel %vm1274, %v1275, %v1273
    %v1277 = vclz %v1276
    %v1278 = vsub.s32 %v1277, 2
    %vm1279 = vcmp.gt.s32.totalorder 0, %v1278
    %v1280 = vsel %vm1279, 0, %v1278
    %v1281 = vsub.s32 32, %v1280
    %v1282 = vshll.u32 %v1273, %v1280
    %v1283 = vshrl.u32 %v1265, %v1281
    %v1284 = vor.u32 %v1282, %v1283
    %v1285 = vsub.s32 4294967266, %v1280
    %v1286 = vadd.s32 %v1285, 127
    %v1287 = vshll.u32 %v1286, 23
    %v1288 = vor.u32 4788187, %v1287
    %v1289 = vand.u32 2147483647, %v1288
    %v1291 = vcvt.s32.f32 %v1284
    %v1292 = vmul.f32 %v1291, %v1289
    %v1293 = vxor.u32 %v1292, 2147483648
    %v1294 = vsel %vm1211, %v1293, %v1292
    %v1295 = vsub.s32 4, %v1271
    %v1296 = vsel %vm1211, %v1295, %v1271
    %v1297 = vsel %vm1210, %v62, %v1294
    %v1298 = vsel %vm1210, 0, %v1296
    %v1299 = vcosq.f32.pop %v1297
    %v1300 = vsinq.f32.pop %v1297
    %vm1301 = vweird.f32 %v62
    %v1302 = vand.u32 %v1298, 3
    %vm1303 = vcmp.lt.s32.totalorder %v1302, 2
    %vm1304 = vcmp.eq.s32.totalorder %v1302, 0
    %v1305 = vxor.u32 %v1300, 2147483648
    %v1306 = vsel %vm1304, %v1299, %v1305
    %vm1307 = vcmp.eq.s32.totalorder %v1302, 2
    %v1308 = vxor.u32 %v1299, 2147483648
    %v1309 = vsel %vm1307, %v1308, %v1300
    %v1310 = vsel %vm1303, %v1306, %v1309
    %v1311 = vsel %vm1301, nan, %v1310
    %v1312 = vand.u32 2147483647, %v63
    %vm1313 = vcmp.le.f32.partialorder %v1312, 0.7853982
    %vm1314 = vcmp.lt.s32.totalorder %v63, 0
    %v1315 = vand.u32 %v63, 2139095040
    %v1316 = vshrl.u32 %v1315, 23
    %v1317 = vsub.s32 %v1316, 127
    %v1318 = vand.u32 2147483647, %v63
    %v1319 = vand.u32 %v1318, 8388607
    %v1320 = vor.u32 %v1319, 8388608
    %v1321 = vsub.s32 0, %v1320
    %v1322 = vadd.s32 %v1317, 1
    %vm1323 = vcmp.gt.s32.totalorder %v1322, 0
    %v1324 = vsel %vm1323, %v1322, 0
    %v1325 = vshrl.u32 %v1324, 5
    %v1326 = vand.u32 %v1324, 31
    %v1327 = vsub.s32 32, %v1326
    %v1328 = vshrl.u32 683565275, %v1327
    %v1329 = vshll.u32 683565275, %v1326
    %v1330 = vshrl.u32 2475754826, %v1327
    %v1331 = vor.u32 %v1329, %v1330
    %v1332 = vshll.u32 2475754826, %v1326
    %v1333 = vshrl.u32 2131351028, %v1327
    %v1334 = vor.u32 %v1332, %v1333
    %v1335 = vshll.u32 2131351028, %v1326
    %v1336 = vshrl.u32 2102212464, %v1327
    %v1337 = vor.u32 %v1335, %v1336
    %v1338 = vshll.u32 2102212464, %v1326
    %v1339 = vshrl.u32 920167782, %v1327
    %v1340 = vor.u32 %v1338, %v1339
    %v1341 = vshll.u32 920167782, %v1326
    %v1342 = vshrl.u32 1326507024, %v1327
    %v1343 = vor.u32 %v1341, %v1342
    %vm1344 = vcmp.lt.s32.totalorder %v1325, 1
    %vm1345 = vcmp.lt.s32.totalorder %v1325, 2
    %vm1346 = vcmp.lt.s32.totalorder %v1325, 3
    %vm1347 = vcmp.lt.s32.totalorder %v1325, 4
    %v1348 = vsel %vm1344, %v1328, %v1331
    %v1349 = vsel %vm1347, %v1337, 2102212464
    %v1350 = vsel %vm1346, %v1334, %v1349
    %v1351 = vsel %vm1345, %v1348, %v1350
    %v1352 = vsel %vm1344, %v1331, %v1334
    %v1353 = vsel %vm1347, %v1340, 920167782
    %v1354 = vsel %vm1346, %v1337, %v1353
    %v1355 = vsel %vm1345, %v1352, %v1354
    %v1356 = vsel %vm1344, %v1334, %v1337
    %v1357 = vsel %vm1347, %v1343, 1326507024
    %v1358 = vsel %vm1346, %v1340, %v1357
    %v1359 = vsel %vm1345, %v1356, %v1358
    %v1360 = vshll.u32 %v1320, 8
    %v1361 = vmul.u32.u64.compose %v1360, %v1359
    %v1362 = vextract.low.u32 %v1361
    %v1363 = vextract.high.u32 %v1361
    %v1364 = vmul.u32.u64.compose %v1360, %v1355
    %v1365 = vextract.low.u32 %v1364
    %v1366 = vextract.high.u32 %v1364
    %v1367 = vmul.u32 %v1360, %v1351
    %v1368 = vadd.s32 %v1363, %v1365
    %vm1369 = vc.u32 %v1363, %v1365
    %v1370 = vadd.s32 %v1366, 1
    %v1371 = vsel %vm1369, %v1370, %v1366
    %v1372 = vadd.s32 %v1367, %v1371
    %v1373 = vadd.s32 %v1372, 536870912
    %v1374 = vshrl.u32 %v1373, 30
    %v1375 = vshll.u32 %v1374, 30
    %v1376 = vsub.s32 %v1372, %v1375
    %vm1377 = vcmp.lt.s32.totalorder %v1376, 0
    %v1378 = vsub.s32 0, %v1376
    %v1379 = vsel %vm1377, %v1378, %v1376
    %v1380 = vclz %v1379
    %v1381 = vsub.s32 %v1380, 2
    %vm1382 = vcmp.gt.s32.totalorder 0, %v1381
    %v1383 = vsel %vm1382, 0, %v1381
    %v1384 = vsub.s32 32, %v1383
    %v1385 = vshll.u32 %v1376, %v1383
    %v1386 = vshrl.u32 %v1368, %v1384
    %v1387 = vor.u32 %v1385, %v1386
    %v1388 = vsub.s32 4294967266, %v1383
    %v1389 = vadd.s32 %v1388, 127
    %v1390 = vshll.u32 %v1389, 23
    %v1391 = vor.u32 4788187, %v1390
    %v1392 = vand.u32 2147483647, %v1391
    %v1394 = vcvt.s32.f32 %v1387
    %v1395 = vmul.f32 %v1394, %v1392
    %v1396 = vxor.u32 %v1395, 2147483648
    %v1397 = vsel %vm1314, %v1396, %v1395
    %v1398 = vsub.s32 4, %v1374
    %v1399 = vsel %vm1314, %v1398, %v1374
    %v1400 = vsel %vm1313, %v63, %v1397
    %v1401 = vsel %vm1313, 0, %v1399
    %v1402 = vcosq.f32.pop %v1400
    %v1403 = vsinq.f32.pop %v1400
    %vm1404 = vweird.f32 %v63
    %v1405 = vand.u32 %v1401, 3
    %vm1406 = vcmp.lt.s32.totalorder %v1405, 2
    %vm1407 = vcmp.eq.s32.totalorder %v1405, 0
    %v1408 = vxor.u32 %v1403, 2147483648
    %v1409 = vsel %vm1407, %v1402, %v1408
    %vm1410 = vcmp.eq.s32.totalorder %v1405, 2
    %v1411 = vxor.u32 %v1402, 2147483648
    %v1412 = vsel %vm1410, %v1411, %v1403
    %v1413 = vsel %vm1406, %v1409, %v1412
    %v1414 = vsel %vm1404, nan, %v1413
    %v1415 = vand.u32 2147483647, %v64
    %vm1416 = vcmp.le.f32.partialorder %v1415, 0.7853982
    %vm1417 = vcmp.lt.s32.totalorder %v64, 0
    %v1418 = vand.u32 %v64, 2139095040
    %v1419 = vshrl.u32 %v1418, 23
    %v1420 = vsub.s32 %v1419, 127
    %v1421 = vand.u32 2147483647, %v64
    %v1422 = vand.u32 %v1421, 8388607
    %v1423 = vor.u32 %v1422, 8388608
    %v1424 = vsub.s32 0, %v1423
    %v1425 = vadd.s32 %v1420, 1
    %vm1426 = vcmp.gt.s32.totalorder %v1425, 0
    %v1427 = vsel %vm1426, %v1425, 0
    %v1428 = vshrl.u32 %v1427, 5
    %v1429 = vand.u32 %v1427, 31
    %v1430 = vsub.s32 32, %v1429
    %v1431 = vshrl.u32 683565275, %v1430
    %v1432 = vshll.u32 683565275, %v1429
    %v1433 = vshrl.u32 2475754826, %v1430
    %v1434 = vor.u32 %v1432, %v1433
    %v1435 = vshll.u32 2475754826, %v1429
    %v1436 = vshrl.u32 2131351028, %v1430
    %v1437 = vor.u32 %v1435, %v1436
    %v1438 = vshll.u32 2131351028, %v1429
    %v1439 = vshrl.u32 2102212464, %v1430
    %v1440 = vor.u32 %v1438, %v1439
    %v1441 = vshll.u32 2102212464, %v1429
    %v1442 = vshrl.u32 920167782, %v1430
    %v1443 = vor.u32 %v1441, %v1442
    %v1444 = vshll.u32 920167782, %v1429
    %v1445 = vshrl.u32 1326507024, %v1430
    %v1446 = vor.u32 %v1444, %v1445
    %vm1447 = vcmp.lt.s32.totalorder %v1428, 1
    %vm1448 = vcmp.lt.s32.totalorder %v1428, 2
    %vm1449 = vcmp.lt.s32.totalorder %v1428, 3
    %vm1450 = vcmp.lt.s32.totalorder %v1428, 4
    %v1451 = vsel %vm1447, %v1431, %v1434
    %v1452 = vsel %vm1450, %v1440, 2102212464
    %v1453 = vsel %vm1449, %v1437, %v1452
    %v1454 = vsel %vm1448, %v1451, %v1453
    %v1455 = vsel %vm1447, %v1434, %v1437
    %v1456 = vsel %vm1450, %v1443, 920167782
    %v1457 = vsel %vm1449, %v1440, %v1456
    %v1458 = vsel %vm1448, %v1455, %v1457
    %v1459 = vsel %vm1447, %v1437, %v1440
    %v1460 = vsel %vm1450, %v1446, 1326507024
    %v1461 = vsel %vm1449, %v1443, %v1460
    %v1462 = vsel %vm1448, %v1459, %v1461
    %v1463 = vshll.u32 %v1423, 8
    %v1464 = vmul.u32.u64.compose %v1463, %v1462
    %v1465 = vextract.low.u32 %v1464
    %v1466 = vextract.high.u32 %v1464
    %v1467 = vmul.u32.u64.compose %v1463, %v1458
    %v1468 = vextract.low.u32 %v1467
    %v1469 = vextract.high.u32 %v1467
    %v1470 = vmul.u32 %v1463, %v1454
    %v1471 = vadd.s32 %v1466, %v1468
    %vm1472 = vc.u32 %v1466, %v1468
    %v1473 = vadd.s32 %v1469, 1
    %v1474 = vsel %vm1472, %v1473, %v1469
    %v1475 = vadd.s32 %v1470, %v1474
    %v1476 = vadd.s32 %v1475, 536870912
    %v1477 = vshrl.u32 %v1476, 30
    %v1478 = vshll.u32 %v1477, 30
    %v1479 = vsub.s32 %v1475, %v1478
    %vm1480 = vcmp.lt.s32.totalorder %v1479, 0
    %v1481 = vsub.s32 0, %v1479
    %v1482 = vsel %vm1480, %v1481, %v1479
    %v1483 = vclz %v1482
    %v1484 = vsub.s32 %v1483, 2
    %vm1485 = vcmp.gt.s32.totalorder 0, %v1484
    %v1486 = vsel %vm1485, 0, %v1484
    %v1487 = vsub.s32 32, %v1486
    %v1488 = vshll.u32 %v1479, %v1486
    %v1489 = vshrl.u32 %v1471, %v1487
    %v1490 = vor.u32 %v1488, %v1489
    %v1491 = vsub.s32 4294967266, %v1486
    %v1492 = vadd.s32 %v1491, 127
    %v1493 = vshll.u32 %v1492, 23
    %v1494 = vor.u32 4788187, %v1493
    %v1495 = vand.u32 2147483647, %v1494
    %v1497 = vcvt.s32.f32 %v1490
    %v1498 = vmul.f32 %v1497, %v1495
    %v1499 = vxor.u32 %v1498, 2147483648
    %v1500 = vsel %vm1417, %v1499, %v1498
    %v1501 = vsub.s32 4, %v1477
    %v1502 = vsel %vm1417, %v1501, %v1477
    %v1503 = vsel %vm1416, %v64, %v1500
    %v1504 = vsel %vm1416, 0, %v1502
    %v1505 = vcosq.f32.pop %v1503
    %v1506 = vsinq.f32.pop %v1503
    %vm1507 = vweird.f32 %v64
    %v1508 = vand.u32 %v1504, 3
    %vm1509 = vcmp.lt.s32.totalorder %v1508, 2
    %vm1510 = vcmp.eq.s32.totalorder %v1508, 0
    %v1511 = vxor.u32 %v1506, 2147483648
    %v1512 = vsel %vm1510, %v1505, %v1511
    %vm1513 = vcmp.eq.s32.totalorder %v1508, 2
    %v1514 = vxor.u32 %v1505, 2147483648
    %v1515 = vsel %vm1513, %v1514, %v1506
    %v1516 = vsel %vm1509, %v1512, %v1515
    %v1517 = vsel %vm1507, nan, %v1516
    %v1518 = vand.u32 2147483647, %v65
    %vm1519 = vcmp.le.f32.partialorder %v1518, 0.7853982
    %vm1520 = vcmp.lt.s32.totalorder %v65, 0
    %v1521 = vand.u32 %v65, 2139095040
    %v1522 = vshrl.u32 %v1521, 23
    %v1523 = vsub.s32 %v1522, 127
    %v1524 = vand.u32 2147483647, %v65
    %v1525 = vand.u32 %v1524, 8388607
    %v1526 = vor.u32 %v1525, 8388608
    %v1527 = vsub.s32 0, %v1526
    %v1528 = vadd.s32 %v1523, 1
    %vm1529 = vcmp.gt.s32.totalorder %v1528, 0
    %v1530 = vsel %vm1529, %v1528, 0
    %v1531 = vshrl.u32 %v1530, 5
    %v1532 = vand.u32 %v1530, 31
    %v1533 = vsub.s32 32, %v1532
    %v1534 = vshrl.u32 683565275, %v1533
    %v1535 = vshll.u32 683565275, %v1532
    %v1536 = vshrl.u32 2475754826, %v1533
    %v1537 = vor.u32 %v1535, %v1536
    %v1538 = vshll.u32 2475754826, %v1532
    %v1539 = vshrl.u32 2131351028, %v1533
    %v1540 = vor.u32 %v1538, %v1539
    %v1541 = vshll.u32 2131351028, %v1532
    %v1542 = vshrl.u32 2102212464, %v1533
    %v1543 = vor.u32 %v1541, %v1542
    %v1544 = vshll.u32 2102212464, %v1532
    %v1545 = vshrl.u32 920167782, %v1533
    %v1546 = vor.u32 %v1544, %v1545
    %v1547 = vshll.u32 920167782, %v1532
    %v1548 = vshrl.u32 1326507024, %v1533
    %v1549 = vor.u32 %v1547, %v1548
    %vm1550 = vcmp.lt.s32.totalorder %v1531, 1
    %vm1551 = vcmp.lt.s32.totalorder %v1531, 2
    %vm1552 = vcmp.lt.s32.totalorder %v1531, 3
    %vm1553 = vcmp.lt.s32.totalorder %v1531, 4
    %v1554 = vsel %vm1550, %v1534, %v1537
    %v1555 = vsel %vm1553, %v1543, 2102212464
    %v1556 = vsel %vm1552, %v1540, %v1555
    %v1557 = vsel %vm1551, %v1554, %v1556
    %v1558 = vsel %vm1550, %v1537, %v1540
    %v1559 = vsel %vm1553, %v1546, 920167782
    %v1560 = vsel %vm1552, %v1543, %v1559
    %v1561 = vsel %vm1551, %v1558, %v1560
    %v1562 = vsel %vm1550, %v1540, %v1543
    %v1563 = vsel %vm1553, %v1549, 1326507024
    %v1564 = vsel %vm1552, %v1546, %v1563
    %v1565 = vsel %vm1551, %v1562, %v1564
    %v1566 = vshll.u32 %v1526, 8
    %v1567 = vmul.u32.u64.compose %v1566, %v1565
    %v1568 = vextract.low.u32 %v1567
    %v1569 = vextract.high.u32 %v1567
    %v1570 = vmul.u32.u64.compose %v1566, %v1561
    %v1571 = vextract.low.u32 %v1570
    %v1572 = vextract.high.u32 %v1570
    %v1573 = vmul.u32 %v1566, %v1557
    %v1574 = vadd.s32 %v1569, %v1571
    %vm1575 = vc.u32 %v1569, %v1571
    %v1576 = vadd.s32 %v1572, 1
    %v1577 = vsel %vm1575, %v1576, %v1572
    %v1578 = vadd.s32 %v1573, %v1577
    %v1579 = vadd.s32 %v1578, 536870912
    %v1580 = vshrl.u32 %v1579, 30
    %v1581 = vshll.u32 %v1580, 30
    %v1582 = vsub.s32 %v1578, %v1581
    %vm1583 = vcmp.lt.s32.totalorder %v1582, 0
    %v1584 = vsub.s32 0, %v1582
    %v1585 = vsel %vm1583, %v1584, %v1582
    %v1586 = vclz %v1585
    %v1587 = vsub.s32 %v1586, 2
    %vm1588 = vcmp.gt.s32.totalorder 0, %v1587
    %v1589 = vsel %vm1588, 0, %v1587
    %v1590 = vsub.s32 32, %v1589
    %v1591 = vshll.u32 %v1582, %v1589
    %v1592 = vshrl.u32 %v1574, %v1590
    %v1593 = vor.u32 %v1591, %v1592
    %v1594 = vsub.s32 4294967266, %v1589
    %v1595 = vadd.s32 %v1594, 127
    %v1596 = vshll.u32 %v1595, 23
    %v1597 = vor.u32 4788187, %v1596
    %v1598 = vand.u32 2147483647, %v1597
    %v1600 = vcvt.s32.f32 %v1593
    %v1601 = vmul.f32 %v1600, %v1598
    %v1602 = vxor.u32 %v1601, 2147483648
    %v1603 = vsel %vm1520, %v1602, %v1601
    %v1604 = vsub.s32 4, %v1580
    %v1605 = vsel %vm1520, %v1604, %v1580
    %v1606 = vsel %vm1519, %v65, %v1603
    %v1607 = vsel %vm1519, 0, %v1605
    %v1608 = vcosq.f32.pop %v1606
    %v1609 = vsinq.f32.pop %v1606
    %vm1610 = vweird.f32 %v65
    %v1611 = vand.u32 %v1607, 3
    %vm1612 = vcmp.lt.s32.totalorder %v1611, 2
    %vm1613 = vcmp.eq.s32.totalorder %v1611, 0
    %v1614 = vxor.u32 %v1609, 2147483648
    %v1615 = vsel %vm1613, %v1608, %v1614
    %vm1616 = vcmp.eq.s32.totalorder %v1611, 2
    %v1617 = vxor.u32 %v1608, 2147483648
    %v1618 = vsel %vm1616, %v1617, %v1609
    %v1619 = vsel %vm1612, %v1615, %v1618
    %v1620 = vsel %vm1610, nan, %v1619
    %v1621 = vand.u32 2147483647, %v66
    %vm1622 = vcmp.le.f32.partialorder %v1621, 0.7853982
    %vm1623 = vcmp.lt.s32.totalorder %v66, 0
    %v1624 = vand.u32 %v66, 2139095040
    %v1625 = vshrl.u32 %v1624, 23
    %v1626 = vsub.s32 %v1625, 127
    %v1627 = vand.u32 2147483647, %v66
    %v1628 = vand.u32 %v1627, 8388607
    %v1629 = vor.u32 %v1628, 8388608
    %v1630 = vsub.s32 0, %v1629
    %v1631 = vadd.s32 %v1626, 1
    %vm1632 = vcmp.gt.s32.totalorder %v1631, 0
    %v1633 = vsel %vm1632, %v1631, 0
    %v1634 = vshrl.u32 %v1633, 5
    %v1635 = vand.u32 %v1633, 31
    %v1636 = vsub.s32 32, %v1635
    %v1637 = vshrl.u32 683565275, %v1636
    %v1638 = vshll.u32 683565275, %v1635
    %v1639 = vshrl.u32 2475754826, %v1636
    %v1640 = vor.u32 %v1638, %v1639
    %v1641 = vshll.u32 2475754826, %v1635
    %v1642 = vshrl.u32 2131351028, %v1636
    %v1643 = vor.u32 %v1641, %v1642
    %v1644 = vshll.u32 2131351028, %v1635
    %v1645 = vshrl.u32 2102212464, %v1636
    %v1646 = vor.u32 %v1644, %v1645
    %v1647 = vshll.u32 2102212464, %v1635
    %v1648 = vshrl.u32 920167782, %v1636
    %v1649 = vor.u32 %v1647, %v1648
    %v1650 = vshll.u32 920167782, %v1635
    %v1651 = vshrl.u32 1326507024, %v1636
    %v1652 = vor.u32 %v1650, %v1651
    %vm1653 = vcmp.lt.s32.totalorder %v1634, 1
    %vm1654 = vcmp.lt.s32.totalorder %v1634, 2
    %vm1655 = vcmp.lt.s32.totalorder %v1634, 3
    %vm1656 = vcmp.lt.s32.totalorder %v1634, 4
    %v1657 = vsel %vm1653, %v1637, %v1640
    %v1658 = vsel %vm1656, %v1646, 2102212464
    %v1659 = vsel %vm1655, %v1643, %v1658
    %v1660 = vsel %vm1654, %v1657, %v1659
    %v1661 = vsel %vm1653, %v1640, %v1643
    %v1662 = vsel %vm1656, %v1649, 920167782
    %v1663 = vsel %vm1655, %v1646, %v1662
    %v1664 = vsel %vm1654, %v1661, %v1663
    %v1665 = vsel %vm1653, %v1643, %v1646
    %v1666 = vsel %vm1656, %v1652, 1326507024
    %v1667 = vsel %vm1655, %v1649, %v1666
    %v1668 = vsel %vm1654, %v1665, %v1667
    %v1669 = vshll.u32 %v1629, 8
    %v1670 = vmul.u32.u64.compose %v1669, %v1668
    %v1671 = vextract.low.u32 %v1670
    %v1672 = vextract.high.u32 %v1670
    %v1673 = vmul.u32.u64.compose %v1669, %v1664
    %v1674 = vextract.low.u32 %v1673
    %v1675 = vextract.high.u32 %v1673
    %v1676 = vmul.u32 %v1669, %v1660
    %v1677 = vadd.s32 %v1672, %v1674
    %vm1678 = vc.u32 %v1672, %v1674
    %v1679 = vadd.s32 %v1675, 1
    %v1680 = vsel %vm1678, %v1679, %v1675
    %v1681 = vadd.s32 %v1676, %v1680
    %v1682 = vadd.s32 %v1681, 536870912
    %v1683 = vshrl.u32 %v1682, 30
    %v1684 = vshll.u32 %v1683, 30
    %v1685 = vsub.s32 %v1681, %v1684
    %vm1686 = vcmp.lt.s32.totalorder %v1685, 0
    %v1687 = vsub.s32 0, %v1685
    %v1688 = vsel %vm1686, %v1687, %v1685
    %v1689 = vclz %v1688
    %v1690 = vsub.s32 %v1689, 2
    %vm1691 = vcmp.gt.s32.totalorder 0, %v1690
    %v1692 = vsel %vm1691, 0, %v1690
    %v1693 = vsub.s32 32, %v1692
    %v1694 = vshll.u32 %v1685, %v1692
    %v1695 = vshrl.u32 %v1677, %v1693
    %v1696 = vor.u32 %v1694, %v1695
    %v1697 = vsub.s32 4294967266, %v1692
    %v1698 = vadd.s32 %v1697, 127
    %v1699 = vshll.u32 %v1698, 23
    %v1700 = vor.u32 4788187, %v1699
    %v1701 = vand.u32 2147483647, %v1700
    %v1703 = vcvt.s32.f32 %v1696
    %v1704 = vmul.f32 %v1703, %v1701
    %v1705 = vxor.u32 %v1704, 2147483648
    %v1706 = vsel %vm1623, %v1705, %v1704
    %v1707 = vsub.s32 4, %v1683
    %v1708 = vsel %vm1623, %v1707, %v1683
    %v1709 = vsel %vm1622, %v66, %v1706
    %v1710 = vsel %vm1622, 0, %v1708
    %v1711 = vcosq.f32.pop %v1709
    %v1712 = vsinq.f32.pop %v1709
    %vm1713 = vweird.f32 %v66
    %v1714 = vand.u32 %v1710, 3
    %vm1715 = vcmp.lt.s32.totalorder %v1714, 2
    %vm1716 = vcmp.eq.s32.totalorder %v1714, 0
    %v1717 = vxor.u32 %v1712, 2147483648
    %v1718 = vsel %vm1716, %v1711, %v1717
    %vm1719 = vcmp.eq.s32.totalorder %v1714, 2
    %v1720 = vxor.u32 %v1711, 2147483648
    %v1721 = vsel %vm1719, %v1720, %v1712
    %v1722 = vsel %vm1715, %v1718, %v1721
    %v1723 = vsel %vm1713, nan, %v1722
    %v1724 = vsel %vm67, 1, 0
    %vm1725 = vcmp.eq.s32.totalorder %v1724, 1
    %v1726 = vsel %vm1725, %v171, %v1002
    %v1727 = vsel %vm1725, %v275, %v1105
    %v1728 = vsel %vm1725, %v379, %v1208
    %v1729 = vsel %vm1725, %v483, %v1311
    %v1730 = vsel %vm1725, %v587, %v1414
    %v1731 = vsel %vm1725, %v691, %v1517
    %v1732 = vsel %vm1725, %v795, %v1620
    %v1733 = vsel %vm1725, %v899, %v1723
    %v1734 = vld [vmem:[#allocation2] sm:$0x3]
    %v1735 = vld [vmem:[#allocation2 + $0x2] sm:$0x3]
    %v1736 = vld [vmem:[#allocation2 + $0x4] sm:$0x3]
    %v1737 = vld [vmem:[#allocation2 + $0x6] sm:$0x3]
    %v1738 = vld [vmem:[#allocation2 + $0x8] sm:$0x3]
    %v1739 = vld [vmem:[#allocation2 + $0xa] sm:$0x3]
    %v1740 = vld [vmem:[#allocation2 + $0xc] sm:$0x3]
    %v1741 = vld [vmem:[#allocation2 + $0xe] sm:$0x3]
    %v1742 = vadd.f32 %v1734, %v1726
    %v1743 = vadd.f32 %v1735, %v1727
    %v1744 = vadd.f32 %v1736, %v1728
    %v1745 = vadd.f32 %v1737, %v1729
    %v1746 = vadd.f32 %v1738, %v1730
    %v1747 = vadd.f32 %v1739, %v1731
    %v1748 = vadd.f32 %v1740, %v1732
    %v1749 = vadd.f32 %v1741, %v1733
    %vm1750 = vcmask 254976
    %1751 = vst.msk [vmem:[#allocation5] sm:$0x3] %vm1750, %v1742
    %1752 = vst.msk [vmem:[#allocation5 + $0x2] sm:$0x3] %vm1750, %v1743
    %1753 = vst.msk [vmem:[#allocation5 + $0x4] sm:$0x3] %vm1750, %v1744
    %1754 = vst.msk [vmem:[#allocation5 + $0x6] sm:$0x3] %vm1750, %v1745
    %1755 = vst.msk [vmem:[#allocation5 + $0x8] sm:$0x3] %vm1750, %v1746
    %1756 = vst.msk [vmem:[#allocation5 + $0xa] sm:$0x3] %vm1750, %v1747
    %1757 = vst.msk [vmem:[#allocation5 + $0xc] sm:$0x3] %vm1750, %v1748
    %1758 = vst.msk [vmem:[#allocation5 + $0xe] sm:$0x3] %vm1750, %v1749
    // Predicated region
    $region10: #{positional_encoding_forward.1} parent=1 // pred_check
      _
    $region11: #{positional_encoding_forward.1} parent=1 // pred_check_branch
      %1760 = sbr.rel (0) target = $region13
    $region12: #{positional_encoding_forward.1} parent=1 // pred_region
      %s1762 = ssub.s32 256, 256
      %1763 = vsyncadd [#allocation4], %s1762
      %s1764 = sshll.u32 [#allocation5], 4
      %s1765 = int_to_ptr.vmem [resolvable:$true] %s1764
      %1770 = dma.vmem_to_hbm [thread:$0]  %s1765, 256, %s1, [#allocation4], 32, 32, 2
    $region13: #{positional_encoding_forward.1} parent=1 // pred_fallthru
      _
    // Predicated region
    $region14: #{positional_encoding_forward.1} parent=1 // pred_check
      _
    $region15: #{positional_encoding_forward.1} parent=1 // pred_check_branch
      %1772 = sbr.rel (0) target = $region17
    $region16: #{positional_encoding_forward.1} parent=1 // pred_region
      %1773 = dma.done [#allocation4], 256
    $region17: #{positional_encoding_forward.1} parent=1 // pred_fallthru
      _
    %1774 = vsyncpa [#allocation3], 1
    %1775 = vsyncpa [#allocation4], 1

</llo_original>
